<compile_context>
chip_gen: v5e
topology: v5e:2x2
jax: 0.10.0
libtpu: 0.0.40
codegen_flags: <defaults>
</compile_context>

<pallas_src>
import functools
import numpy as np
import jax
import jax.numpy as jnp
from jax.experimental import pallas as pl
from jax.experimental.pallas import tpu as pltpu


def _pick_chunk(batch):
    # Lane-dense candidate slabs (multiples of 128). Prefer fat steps (amortize the
    # fixed per-step cost) but keep >= 2 grid iterations for v7x megacore sharding.
    for c in (512, 256, 128):
        if batch >= 2 * c:
            return c
    return 128


def _pack_code_pairs(code_re, code_im):
    """Pairwise codeword products packed for a single real matmul.

    M[i,j,p] = conj(code[i,p]) * code[j,p]   (code = C^T, so code[i,p] = C[p,i]).
    Top-half row r = j*dimK + i  : [ M_re[i,j,:], -M_im[i,j,:] ]  -> Re U[i,j]
    Bottom-half row r            : [ M_im[i,j,:],  M_re[i,j,:] ]  -> Im U[i,j]
    so that A_pack @ [d_re; d_im] yields all logical-U entries for every candidate,
    with the j-th column of U landing as a contiguous dimK-row sublane block.
    """
    dimk, dim_phys = code_re.shape
    kk = dimk * dimk
    kk_pad = ((kk + 7) // 8) * 8          # sublane-tile aligned re/im halves
    m_re = (code_re[:, None, :] * code_re[None, :, :]
            + code_im[:, None, :] * code_im[None, :, :])
    m_im = (code_re[:, None, :] * code_im[None, :, :]
            - code_im[:, None, :] * code_re[None, :, :])
    m_re = jnp.transpose(m_re, (1, 0, 2)).reshape(kk, dim_phys)   # row = j*dimK + i
    m_im = jnp.transpose(m_im, (1, 0, 2)).reshape(kk, dim_phys)
    top = jnp.concatenate([m_re, -m_im], axis=1)                  # (kk, 2*2^N)
    bot = jnp.concatenate([m_im, m_re], axis=1)
    pad = kk_pad - kk
    if pad:
        top = jnp.pad(top, ((0, pad), (0, 0)))
        bot = jnp.pad(bot, ((0, pad), (0, 0)))
    return jnp.concatenate([top, bot], axis=0)                    # (2*kk_pad, 2*2^N)


def _transversal_loss_kernel(theta_ref, apack_ref, o_ref, *, dimk):
    # theta_ref : (N, CHUNK)          f32  Rz angles, candidates on lanes
    # apack_ref : (2*KKpad, 2*2^N)    f32  packed pairwise codeword products
    # o_ref     : (1, CHUNK)          f32  per-candidate loss (lane dense)
    num_qubit, chunk = theta_ref.shape
    kk_pad = apack_ref.shape[0] // 2
    dim_phys = apack_ref.shape[1] // 2

    theta = theta_ref[...]
    apack = apack_ref[...]

    # ---- Rz kron diagonal, lane-dense over candidates (VPU bits + EUP cos/sin) ----
    #   phase[p, c] = 0.5 * sum_n (2*bit_n(p) - 1) * theta[n, c]   (qubit 0 = MSB)
    pidx = jax.lax.broadcasted_iota(jnp.int32, (dim_phys, 1), 0)
    phase = jnp.zeros((dim_phys, chunk), jnp.float32)
    for n in range(num_qubit):                                    # unrolled, N tiny
        bit = jnp.bitwise_and(jnp.right_shift(pidx, num_qubit - 1 - n), 1)
        sign = (2 * bit - 1).astype(jnp.float32)                  # (2^N, 1)
        phase = phase + sign * theta[n:n + 1, :]                  # (2^N, CHUNK)
    phase = 0.5 * phase
    d_pack = jnp.concatenate([jnp.cos(phase), jnp.sin(phase)], axis=0)  # (2*2^N, CHUNK)

    # ---- one natural-orientation MXU contraction: all candidates' U entries -------
    #   u[j*dimK+i, c]        = Re U_c[i, j]
    #   u[kk_pad+j*dimK+i, c] = Im U_c[i, j]
    # TODO(synk): at 2^N in the thousands, tile the 2*2^N contraction axis with an
    # "arbitrary" grid dim + f32 VMEM accumulator (one size class earlier on v7x,
    # whose physical VMEM ceiling is 64 MiB).
    u = jnp.dot(apack, d_pack, preferred_element_type=jnp.float32)   # (2*kk_pad, CHUNK)
    u_re = u[:kk_pad]                                                # aligned split
    u_im = u[kk_pad:]

    # Column tiles of U (logical index i on sublanes), hoisted out of the Gram loop.
    ucol_re = [u_re[j * dimk:(j + 1) * dimk, :] for j in range(dimk)]
    ucol_im = [u_im[j * dimk:(j + 1) * dimk, :] for j in range(dimk)]

    # ---- Gram G_c = U_c U_c^H column-by-column on the VPU; direct (G - I) loss -----
    row_idx = jax.lax.broadcasted_iota(jnp.int32, (dimk, chunk), 0)
    resid = jnp.zeros((dimk, chunk), jnp.float32)
    for l in range(dimk):                                         # unrolled, K tiny
        gl_re = jnp.zeros((dimk, chunk), jnp.float32)
        gl_im = jnp.zeros((dimk, chunk), jnp.float32)
        for j in range(dimk):
            ur, ui = ucol_re[j], ucol_im[j]
            url = ur[l:l + 1, :]                                  # (1, CHUNK) = Re U_c[l, j]
            uil = ui[l:l + 1, :]
            gl_re = gl_re + ur * url + ui * uil                   # Re G_c[:, l]
            gl_im = gl_im + ui * url - ur * uil                   # Im G_c[:, l]
        # subtract-before-square on the diagonal (numerically safe form; do NOT
        # expand into sum|G|^2 - 2 tr(UU^H) + K, which cancels in f32)
        gl_re = gl_re - (row_idx == l).astype(jnp.float32)
        resid = resid + gl_re * gl_re + gl_im * gl_im
    o_ref[...] = jnp.sum(resid, axis=0, keepdims=True)            # one sublane reduce


@jax.jit
def _transversal_loss_batched(code_re, code_im, theta):
    """code_*: (dimK, 2^N) f32 ; theta: (B, N) f32  ->  (B,) f32 losses."""
    dimk, dim_phys = code_re.shape
    batch, num_qubit = theta.shape
    apack = _pack_code_pairs(code_re, code_im)        # packed once, outside the kernel

    chunk = _pick_chunk(batch)
    b_pad = ((batch + chunk - 1) // chunk) * chunk
    # Padded candidates use theta = 0 -> d = 1 -> U = C^H C (= I for an isometric
    # code), i.e. loss ~0; either way those lanes are sliced off below.
    theta_t = jnp.pad(theta, ((0, b_pad - batch), (0, 0))).T      # (N, b_pad)

    kernel = functools.partial(_transversal_loss_kernel, dimk=dimk)
    out = pl.pallas_call(
        kernel,
        out_shape=jax.ShapeDtypeStruct((1, b_pad), jnp.float32),
        grid_spec=pltpu.PrefetchScalarGridSpec(
            num_scalar_prefetch=0,
            grid=(b_pad // chunk,),
            in_specs=[
                pl.BlockSpec((num_qubit, chunk), lambda g: (0, g)),   # theta slab
                pl.BlockSpec(apack.shape, lambda g: (0, 0)),          # packed code (block idx constant -> no re-DMA)
            ],
            out_specs=pl.BlockSpec((1, chunk), lambda g: (0, g)),
        ),
        compiler_params=pltpu.CompilerParams(
            dimension_semantics=("parallel",),          # shard candidate slabs over TCs
            vmem_limit_bytes=32 * 1024 * 1024),         # explicit headroom (safe on v5e/v6e/v7x)
    )(theta_t, apack)
    return out[0, :batch]


def search_transversal_gate_forward(code_re, code_im, theta_rz):
    """Forward of SearchTransversalGateModel (tag_rz=True path).

    code_*  : (dimK, 2^N) float32 real/imag planes of `code` (rows of C^T)
    theta_rz: (N,) single candidate -> scalar loss, or (B, N) batch -> (B,) losses
    """
    # TODO(synk): only the tag_rz=True / tag_phase=False / target_gate=None branch is
    # implemented; the SU(2)-manifold and target-gate branches are alternative configs.
    code_re = jnp.asarray(code_re, jnp.float32)
    code_im = jnp.asarray(code_im, jnp.float32)
    theta = jnp.asarray(theta_rz, jnp.float32)
    single = theta.ndim == 1
    if single:
        theta = theta[None, :]
    losses = _transversal_loss_batched(code_re, code_im, theta)
    return losses[0] if single else losses


if __name__ == "__main__":
    N_QUBIT = 5               # num_qubit
    DIM_K = 4                 # dimK (number of logical codewords)
    DIM_PHYS = 2 ** N_QUBIT
    BATCH = 256               # theta candidates evaluated in one pallas_call

    key = jax.random.PRNGKey(0)
    k1, k2, k3 = jax.random.split(key, 3)

    # Deterministic synthetic code: random complex matrix with orthonormal columns
    # (a valid [[2^N, dimK]] encoding isometry); code = C^T, shape (dimK, 2^N).
    ar = np.asarray(jax.random.normal(k1, (DIM_PHYS, DIM_K), dtype=jnp.float32))
    ai = np.asarray(jax.random.normal(k2, (DIM_PHYS, DIM_K), dtype=jnp.float32))
    q, _ = np.linalg.qr((ar + 1j * ai).astype(np.complex128))   # Q^H Q = I
    code = q.T                                                  # (dimK, 2^N)

    # Batch of theta_rz candidates (torch.randn(num_qubit) per candidate).
    thetas = jax.random.normal(k3, (BATCH, N_QUBIT), dtype=jnp.float32)

    code_re = jnp.asarray(code.real, dtype=jnp.float32)
    code_im = jnp.asarray(code.imag, dtype=jnp.float32)

    losses = jax.block_until_ready(
        search_transversal_gate_forward(code_re, code_im, thetas))
    loss0 = jax.block_until_ready(
        search_transversal_gate_forward(code_re, code_im, thetas[0]))

    # NumPy reference (mirrors the PyTorch forward, complex128).
    theta_np = np.asarray(thetas, dtype=np.float64)
    bits = (np.arange(DIM_PHYS)[:, None] >> (N_QUBIT - 1 - np.arange(N_QUBIT))[None, :]) & 1
    sign = 2 * bits - 1                                         # (2^N, N)
    C = code.T                                                  # (2^N, dimK)
    ref = np.empty(BATCH, dtype=np.float64)
    for b in range(BATCH):
        d = np.exp(0.5j * (sign @ theta_np[b]))
        U = C.conj().T @ (d[:, None] * C)
        ref[b] = np.sum(np.abs(U @ U.conj().T - np.eye(DIM_K)) ** 2)

    got = np.asarray(losses, dtype=np.float64)
    assert got.shape == (BATCH,)
    assert np.allclose(got, ref, rtol=2e-3, atol=1e-3), float(np.abs(got - ref).max())
    assert abs(float(loss0) - ref[0]) <= 1e-3 + 2e-3 * abs(ref[0]), (float(loss0), ref[0])
    print("KERNEL_OK")
</pallas_src>

<mosaic_0001>
module attributes {stable_mosaic.version = 11 : i64} {
  func.func @_transversal_loss_kernel(%arg0: i32, %arg1: memref<5x128xf32, #tpu.memory_space<vmem>>, %arg2: memref<32x64xf32, #tpu.memory_space<vmem>>, %arg3: memref<1x128xf32, #tpu.memory_space<vmem>>) attributes {dimension_semantics = [#tpu.dimension_semantics<parallel>], iteration_bounds = array<i64: 2>, scalar_prefetch = 0 : i64, scratch_operands = 0 : i64, tpu.core_type = #tpu.core_type<tc>, window_params = [{transform_indices = @transform_0, window_bounds = array<i64: 5, 128>}, {pipeline_mode = #tpu.pipeline_mode<synchronous>, transform_indices = @transform_1, window_bounds = array<i64: 32, 64>}, {transform_indices = @transform_2, window_bounds = array<i64: 1, 128>}]} {
    %c0 = arith.constant 0 : index
    %c0_0 = arith.constant 0 : index
    %0 = vector.load %arg1[%c0, %c0_0] : memref<5x128xf32, #tpu.memory_space<vmem>>, vector<5x128xf32>
    %c0_1 = arith.constant 0 : index
    %c0_2 = arith.constant 0 : index
    %1 = vector.load %arg2[%c0_1, %c0_2] : memref<32x64xf32, #tpu.memory_space<vmem>>, vector<32x64xf32>
    %2 = tpu.iota {dimensions = array<i32: 0>} : vector<32x1xi32>
    %cst = arith.constant 0.000000e+00 : f32
    %3 = vector.broadcast %cst : f32 to vector<32x128xf32>
    %c4_i32 = arith.constant 4 : i32
    %4 = vector.broadcast %c4_i32 : i32 to vector<32x1xi32>
    %5 = arith.shrsi %2, %4 : vector<32x1xi32>
    %c1_i32 = arith.constant 1 : i32
    %6 = vector.broadcast %c1_i32 : i32 to vector<32x1xi32>
    %7 = arith.andi %5, %6 : vector<32x1xi32>
    %c2_i32 = arith.constant 2 : i32
    %8 = vector.broadcast %c2_i32 : i32 to vector<32x1xi32>
    %9 = arith.muli %8, %7 : vector<32x1xi32>
    %c1_i32_3 = arith.constant 1 : i32
    %10 = vector.broadcast %c1_i32_3 : i32 to vector<32x1xi32>
    %11 = arith.subi %9, %10 : vector<32x1xi32>
    %12 = arith.sitofp %11 : vector<32x1xi32> to vector<32x1xf32>
    %13 = vector.extract_strided_slice %0 {offsets = [0, 0], sizes = [1, 128], strides = [1, 1]} : vector<5x128xf32> to vector<1x128xf32>
    %14 = vector.broadcast %12 : vector<32x1xf32> to vector<32x128xf32>
    %15 = vector.broadcast %13 : vector<1x128xf32> to vector<32x128xf32>
    %16 = arith.mulf %14, %15 : vector<32x128xf32>
    %17 = arith.addf %3, %16 : vector<32x128xf32>
    %c3_i32 = arith.constant 3 : i32
    %18 = vector.broadcast %c3_i32 : i32 to vector<32x1xi32>
    %19 = arith.shrsi %2, %18 : vector<32x1xi32>
    %c1_i32_4 = arith.constant 1 : i32
    %20 = vector.broadcast %c1_i32_4 : i32 to vector<32x1xi32>
    %21 = arith.andi %19, %20 : vector<32x1xi32>
    %c2_i32_5 = arith.constant 2 : i32
    %22 = vector.broadcast %c2_i32_5 : i32 to vector<32x1xi32>
    %23 = arith.muli %22, %21 : vector<32x1xi32>
    %c1_i32_6 = arith.constant 1 : i32
    %24 = vector.broadcast %c1_i32_6 : i32 to vector<32x1xi32>
    %25 = arith.subi %23, %24 : vector<32x1xi32>
    %26 = arith.sitofp %25 : vector<32x1xi32> to vector<32x1xf32>
    %27 = vector.extract_strided_slice %0 {offsets = [1, 0], sizes = [1, 128], strides = [1, 1]} : vector<5x128xf32> to vector<1x128xf32>
    %28 = vector.broadcast %26 : vector<32x1xf32> to vector<32x128xf32>
    %29 = vector.broadcast %27 : vector<1x128xf32> to vector<32x128xf32>
    %30 = arith.mulf %28, %29 : vector<32x128xf32>
    %31 = arith.addf %17, %30 : vector<32x128xf32>
    %c2_i32_7 = arith.constant 2 : i32
    %32 = vector.broadcast %c2_i32_7 : i32 to vector<32x1xi32>
    %33 = arith.shrsi %2, %32 : vector<32x1xi32>
    %c1_i32_8 = arith.constant 1 : i32
    %34 = vector.broadcast %c1_i32_8 : i32 to vector<32x1xi32>
    %35 = arith.andi %33, %34 : vector<32x1xi32>
    %c2_i32_9 = arith.constant 2 : i32
    %36 = vector.broadcast %c2_i32_9 : i32 to vector<32x1xi32>
    %37 = arith.muli %36, %35 : vector<32x1xi32>
    %c1_i32_10 = arith.constant 1 : i32
    %38 = vector.broadcast %c1_i32_10 : i32 to vector<32x1xi32>
    %39 = arith.subi %37, %38 : vector<32x1xi32>
    %40 = arith.sitofp %39 : vector<32x1xi32> to vector<32x1xf32>
    %41 = vector.extract_strided_slice %0 {offsets = [2, 0], sizes = [1, 128], strides = [1, 1]} : vector<5x128xf32> to vector<1x128xf32>
    %42 = vector.broadcast %40 : vector<32x1xf32> to vector<32x128xf32>
    %43 = vector.broadcast %41 : vector<1x128xf32> to vector<32x128xf32>
    %44 = arith.mulf %42, %43 : vector<32x128xf32>
    %45 = arith.addf %31, %44 : vector<32x128xf32>
    %c1_i32_11 = arith.constant 1 : i32
    %46 = vector.broadcast %c1_i32_11 : i32 to vector<32x1xi32>
    %47 = arith.shrsi %2, %46 : vector<32x1xi32>
    %c1_i32_12 = arith.constant 1 : i32
    %48 = vector.broadcast %c1_i32_12 : i32 to vector<32x1xi32>
    %49 = arith.andi %47, %48 : vector<32x1xi32>
    %c2_i32_13 = arith.constant 2 : i32
    %50 = vector.broadcast %c2_i32_13 : i32 to vector<32x1xi32>
    %51 = arith.muli %50, %49 : vector<32x1xi32>
    %c1_i32_14 = arith.constant 1 : i32
    %52 = vector.broadcast %c1_i32_14 : i32 to vector<32x1xi32>
    %53 = arith.subi %51, %52 : vector<32x1xi32>
    %54 = arith.sitofp %53 : vector<32x1xi32> to vector<32x1xf32>
    %55 = vector.extract_strided_slice %0 {offsets = [3, 0], sizes = [1, 128], strides = [1, 1]} : vector<5x128xf32> to vector<1x128xf32>
    %56 = vector.broadcast %54 : vector<32x1xf32> to vector<32x128xf32>
    %57 = vector.broadcast %55 : vector<1x128xf32> to vector<32x128xf32>
    %58 = arith.mulf %56, %57 : vector<32x128xf32>
    %59 = arith.addf %45, %58 : vector<32x128xf32>
    %c0_i32 = arith.constant 0 : i32
    %60 = vector.broadcast %c0_i32 : i32 to vector<32x1xi32>
    %61 = arith.shrsi %2, %60 : vector<32x1xi32>
    %c1_i32_15 = arith.constant 1 : i32
    %62 = vector.broadcast %c1_i32_15 : i32 to vector<32x1xi32>
    %63 = arith.andi %61, %62 : vector<32x1xi32>
    %c2_i32_16 = arith.constant 2 : i32
    %64 = vector.broadcast %c2_i32_16 : i32 to vector<32x1xi32>
    %65 = arith.muli %64, %63 : vector<32x1xi32>
    %c1_i32_17 = arith.constant 1 : i32
    %66 = vector.broadcast %c1_i32_17 : i32 to vector<32x1xi32>
    %67 = arith.subi %65, %66 : vector<32x1xi32>
    %68 = arith.sitofp %67 : vector<32x1xi32> to vector<32x1xf32>
    %69 = vector.extract_strided_slice %0 {offsets = [4, 0], sizes = [1, 128], strides = [1, 1]} : vector<5x128xf32> to vector<1x128xf32>
    %70 = vector.broadcast %68 : vector<32x1xf32> to vector<32x128xf32>
    %71 = vector.broadcast %69 : vector<1x128xf32> to vector<32x128xf32>
    %72 = arith.mulf %70, %71 : vector<32x128xf32>
    %73 = arith.addf %59, %72 : vector<32x128xf32>
    %cst_18 = arith.constant 5.000000e-01 : f32
    %74 = vector.broadcast %cst_18 : f32 to vector<32x128xf32>
    %75 = arith.mulf %74, %73 : vector<32x128xf32>
    %76 = math.cos %75 : vector<32x128xf32>
    %77 = math.sin %75 : vector<32x128xf32>
    %78 = tpu.concatenate %76, %77 in 0 : vector<32x128xf32>, vector<32x128xf32> -> vector<64x128xf32>
    %cst_19 = arith.constant dense<0.000000e+00> : vector<32x128xf32>
    %79 = tpu.matmul %1, %78, %cst_19 {dimension_numbers = #tpu.dot_dimension_numbers<[1], [0], [0], [1], [0, 0, 1, 1], [], []>} : vector<32x64xf32>, vector<64x128xf32>, vector<32x128xf32> -> vector<32x128xf32>
    %80 = vector.extract_strided_slice %79 {offsets = [0, 0], sizes = [16, 128], strides = [1, 1]} : vector<32x128xf32> to vector<16x128xf32>
    %81 = vector.extract_strided_slice %79 {offsets = [16, 0], sizes = [16, 128], strides = [1, 1]} : vector<32x128xf32> to vector<16x128xf32>
    %82 = vector.extract_strided_slice %80 {offsets = [0, 0], sizes = [4, 128], strides = [1, 1]} : vector<16x128xf32> to vector<4x128xf32>
    %83 = vector.extract_strided_slice %80 {offsets = [4, 0], sizes = [4, 128], strides = [1, 1]} : vector<16x128xf32> to vector<4x128xf32>
    %84 = vector.extract_strided_slice %80 {offsets = [8, 0], sizes = [4, 128], strides = [1, 1]} : vector<16x128xf32> to vector<4x128xf32>
    %85 = vector.extract_strided_slice %80 {offsets = [12, 0], sizes = [4, 128], strides = [1, 1]} : vector<16x128xf32> to vector<4x128xf32>
    %86 = vector.extract_strided_slice %81 {offsets = [0, 0], sizes = [4, 128], strides = [1, 1]} : vector<16x128xf32> to vector<4x128xf32>
    %87 = vector.extract_strided_slice %81 {offsets = [4, 0], sizes = [4, 128], strides = [1, 1]} : vector<16x128xf32> to vector<4x128xf32>
    %88 = vector.extract_strided_slice %81 {offsets = [8, 0], sizes = [4, 128], strides = [1, 1]} : vector<16x128xf32> to vector<4x128xf32>
    %89 = vector.extract_strided_slice %81 {offsets = [12, 0], sizes = [4, 128], strides = [1, 1]} : vector<16x128xf32> to vector<4x128xf32>
    %90 = tpu.iota {dimensions = array<i32: 0>} : vector<4x128xi32>
    %cst_20 = arith.constant 0.000000e+00 : f32
    %91 = vector.broadcast %cst_20 : f32 to vector<4x128xf32>
    %cst_21 = arith.constant 0.000000e+00 : f32
    %92 = vector.broadcast %cst_21 : f32 to vector<4x128xf32>
    %cst_22 = arith.constant 0.000000e+00 : f32
    %93 = vector.broadcast %cst_22 : f32 to vector<4x128xf32>
    %94 = vector.extract_strided_slice %82 {offsets = [0, 0], sizes = [1, 128], strides = [1, 1]} : vector<4x128xf32> to vector<1x128xf32>
    %95 = vector.extract_strided_slice %86 {offsets = [0, 0], sizes = [1, 128], strides = [1, 1]} : vector<4x128xf32> to vector<1x128xf32>
    %96 = vector.broadcast %94 : vector<1x128xf32> to vector<4x128xf32>
    %97 = arith.mulf %82, %96 : vector<4x128xf32>
    %98 = arith.addf %92, %97 : vector<4x128xf32>
    %99 = vector.broadcast %95 : vector<1x128xf32> to vector<4x128xf32>
    %100 = arith.mulf %86, %99 : vector<4x128xf32>
    %101 = arith.addf %98, %100 : vector<4x128xf32>
    %102 = vector.broadcast %94 : vector<1x128xf32> to vector<4x128xf32>
    %103 = arith.mulf %86, %102 : vector<4x128xf32>
    %104 = arith.addf %93, %103 : vector<4x128xf32>
    %105 = vector.broadcast %95 : vector<1x128xf32> to vector<4x128xf32>
    %106 = arith.mulf %82, %105 : vector<4x128xf32>
    %107 = arith.subf %104, %106 : vector<4x128xf32>
    %108 = vector.extract_strided_slice %83 {offsets = [0, 0], sizes = [1, 128], strides = [1, 1]} : vector<4x128xf32> to vector<1x128xf32>
    %109 = vector.extract_strided_slice %87 {offsets = [0, 0], sizes = [1, 128], strides = [1, 1]} : vector<4x128xf32> to vector<1x128xf32>
    %110 = vector.broadcast %108 : vector<1x128xf32> to vector<4x128xf32>
    %111 = arith.mulf %83, %110 : vector<4x128xf32>
    %112 = arith.addf %101, %111 : vector<4x128xf32>
    %113 = vector.broadcast %109 : vector<1x128xf32> to vector<4x128xf32>
    %114 = arith.mulf %87, %113 : vector<4x128xf32>
    %115 = arith.addf %112, %114 : vector<4x128xf32>
    %116 = vector.broadcast %108 : vector<1x128xf32> to vector<4x128xf32>
    %117 = arith.mulf %87, %116 : vector<4x128xf32>
    %118 = arith.addf %107, %117 : vector<4x128xf32>
    %119 = vector.broadcast %109 : vector<1x128xf32> to vector<4x128xf32>
    %120 = arith.mulf %83, %119 : vector<4x128xf32>
    %121 = arith.subf %118, %120 : vector<4x128xf32>
    %122 = vector.extract_strided_slice %84 {offsets = [0, 0], sizes = [1, 128], strides = [1, 1]} : vector<4x128xf32> to vector<1x128xf32>
    %123 = vector.extract_strided_slice %88 {offsets = [0, 0], sizes = [1, 128], strides = [1, 1]} : vector<4x128xf32> to vector<1x128xf32>
    %124 = vector.broadcast %122 : vector<1x128xf32> to vector<4x128xf32>
    %125 = arith.mulf %84, %124 : vector<4x128xf32>
    %126 = arith.addf %115, %125 : vector<4x128xf32>
    %127 = vector.broadcast %123 : vector<1x128xf32> to vector<4x128xf32>
    %128 = arith.mulf %88, %127 : vector<4x128xf32>
    %129 = arith.addf %126, %128 : vector<4x128xf32>
    %130 = vector.broadcast %122 : vector<1x128xf32> to vector<4x128xf32>
    %131 = arith.mulf %88, %130 : vector<4x128xf32>
    %132 = arith.addf %121, %131 : vector<4x128xf32>
    %133 = vector.broadcast %123 : vector<1x128xf32> to vector<4x128xf32>
    %134 = arith.mulf %84, %133 : vector<4x128xf32>
    %135 = arith.subf %132, %134 : vector<4x128xf32>
    %136 = vector.extract_strided_slice %85 {offsets = [0, 0], sizes = [1, 128], strides = [1, 1]} : vector<4x128xf32> to vector<1x128xf32>
    %137 = vector.extract_strided_slice %89 {offsets = [0, 0], sizes = [1, 128], strides = [1, 1]} : vector<4x128xf32> to vector<1x128xf32>
    %138 = vector.broadcast %136 : vector<1x128xf32> to vector<4x128xf32>
    %139 = arith.mulf %85, %138 : vector<4x128xf32>
    %140 = arith.addf %129, %139 : vector<4x128xf32>
    %141 = vector.broadcast %137 : vector<1x128xf32> to vector<4x128xf32>
    %142 = arith.mulf %89, %141 : vector<4x128xf32>
    %143 = arith.addf %140, %142 : vector<4x128xf32>
    %144 = vector.broadcast %136 : vector<1x128xf32> to vector<4x128xf32>
    %145 = arith.mulf %89, %144 : vector<4x128xf32>
    %146 = arith.addf %135, %145 : vector<4x128xf32>
    %147 = vector.broadcast %137 : vector<1x128xf32> to vector<4x128xf32>
    %148 = arith.mulf %85, %147 : vector<4x128xf32>
    %149 = arith.subf %146, %148 : vector<4x128xf32>
    %c0_i32_23 = arith.constant 0 : i32
    %150 = vector.broadcast %c0_i32_23 : i32 to vector<4x128xi32>
    %151 = arith.cmpi eq, %90, %150 : vector<4x128xi32>
    %152 = arith.extui %151 : vector<4x128xi1> to vector<4x128xi32>
    %153 = arith.sitofp %152 : vector<4x128xi32> to vector<4x128xf32>
    %154 = arith.subf %143, %153 : vector<4x128xf32>
    %155 = arith.mulf %154, %154 : vector<4x128xf32>
    %156 = arith.addf %91, %155 : vector<4x128xf32>
    %157 = arith.mulf %149, %149 : vector<4x128xf32>
    %158 = arith.addf %156, %157 : vector<4x128xf32>
    %cst_24 = arith.constant 0.000000e+00 : f32
    %159 = vector.broadcast %cst_24 : f32 to vector<4x128xf32>
    %cst_25 = arith.constant 0.000000e+00 : f32
    %160 = vector.broadcast %cst_25 : f32 to vector<4x128xf32>
    %161 = vector.extract_strided_slice %82 {offsets = [1, 0], sizes = [1, 128], strides = [1, 1]} : vector<4x128xf32> to vector<1x128xf32>
    %162 = vector.extract_strided_slice %86 {offsets = [1, 0], sizes = [1, 128], strides = [1, 1]} : vector<4x128xf32> to vector<1x128xf32>
    %163 = vector.broadcast %161 : vector<1x128xf32> to vector<4x128xf32>
    %164 = arith.mulf %82, %163 : vector<4x128xf32>
    %165 = arith.addf %159, %164 : vector<4x128xf32>
    %166 = vector.broadcast %162 : vector<1x128xf32> to vector<4x128xf32>
    %167 = arith.mulf %86, %166 : vector<4x128xf32>
    %168 = arith.addf %165, %167 : vector<4x128xf32>
    %169 = vector.broadcast %161 : vector<1x128xf32> to vector<4x128xf32>
    %170 = arith.mulf %86, %169 : vector<4x128xf32>
    %171 = arith.addf %160, %170 : vector<4x128xf32>
    %172 = vector.broadcast %162 : vector<1x128xf32> to vector<4x128xf32>
    %173 = arith.mulf %82, %172 : vector<4x128xf32>
    %174 = arith.subf %171, %173 : vector<4x128xf32>
    %175 = vector.extract_strided_slice %83 {offsets = [1, 0], sizes = [1, 128], strides = [1, 1]} : vector<4x128xf32> to vector<1x128xf32>
    %176 = vector.extract_strided_slice %87 {offsets = [1, 0], sizes = [1, 128], strides = [1, 1]} : vector<4x128xf32> to vector<1x128xf32>
    %177 = vector.broadcast %175 : vector<1x128xf32> to vector<4x128xf32>
    %178 = arith.mulf %83, %177 : vector<4x128xf32>
    %179 = arith.addf %168, %178 : vector<4x128xf32>
    %180 = vector.broadcast %176 : vector<1x128xf32> to vector<4x128xf32>
    %181 = arith.mulf %87, %180 : vector<4x128xf32>
    %182 = arith.addf %179, %181 : vector<4x128xf32>
    %183 = vector.broadcast %175 : vector<1x128xf32> to vector<4x128xf32>
    %184 = arith.mulf %87, %183 : vector<4x128xf32>
    %185 = arith.addf %174, %184 : vector<4x128xf32>
    %186 = vector.broadcast %176 : vector<1x128xf32> to vector<4x128xf32>
    %187 = arith.mulf %83, %186 : vector<4x128xf32>
    %188 = arith.subf %185, %187 : vector<4x128xf32>
    %189 = vector.extract_strided_slice %84 {offsets = [1, 0], sizes = [1, 128], strides = [1, 1]} : vector<4x128xf32> to vector<1x128xf32>
    %190 = vector.extract_strided_slice %88 {offsets = [1, 0], sizes = [1, 128], strides = [1, 1]} : vector<4x128xf32> to vector<1x128xf32>
    %191 = vector.broadcast %189 : vector<1x128xf32> to vector<4x128xf32>
    %192 = arith.mulf %84, %191 : vector<4x128xf32>
    %193 = arith.addf %182, %192 : vector<4x128xf32>
    %194 = vector.broadcast %190 : vector<1x128xf32> to vector<4x128xf32>
    %195 = arith.mulf %88, %194 : vector<4x128xf32>
    %196 = arith.addf %193, %195 : vector<4x128xf32>
    %197 = vector.broadcast %189 : vector<1x128xf32> to vector<4x128xf32>
    %198 = arith.mulf %88, %197 : vector<4x128xf32>
    %199 = arith.addf %188, %198 : vector<4x128xf32>
    %200 = vector.broadcast %190 : vector<1x128xf32> to vector<4x128xf32>
    %201 = arith.mulf %84, %200 : vector<4x128xf32>
    %202 = arith.subf %199, %201 : vector<4x128xf32>
    %203 = vector.extract_strided_slice %85 {offsets = [1, 0], sizes = [1, 128], strides = [1, 1]} : vector<4x128xf32> to vector<1x128xf32>
    %204 = vector.extract_strided_slice %89 {offsets = [1, 0], sizes = [1, 128], strides = [1, 1]} : vector<4x128xf32> to vector<1x128xf32>
    %205 = vector.broadcast %203 : vector<1x128xf32> to vector<4x128xf32>
    %206 = arith.mulf %85, %205 : vector<4x128xf32>
    %207 = arith.addf %196, %206 : vector<4x128xf32>
    %208 = vector.broadcast %204 : vector<1x128xf32> to vector<4x128xf32>
    %209 = arith.mulf %89, %208 : vector<4x128xf32>
    %210 = arith.addf %207, %209 : vector<4x128xf32>
    %211 = vector.broadcast %203 : vector<1x128xf32> to vector<4x128xf32>
    %212 = arith.mulf %89, %211 : vector<4x128xf32>
    %213 = arith.addf %202, %212 : vector<4x128xf32>
    %214 = vector.broadcast %204 : vector<1x128xf32> to vector<4x128xf32>
    %215 = arith.mulf %85, %214 : vector<4x128xf32>
    %216 = arith.subf %213, %215 : vector<4x128xf32>
    %c1_i32_26 = arith.constant 1 : i32
    %217 = vector.broadcast %c1_i32_26 : i32 to vector<4x128xi32>
    %218 = arith.cmpi eq, %90, %217 : vector<4x128xi32>
    %219 = arith.extui %218 : vector<4x128xi1> to vector<4x128xi32>
    %220 = arith.sitofp %219 : vector<4x128xi32> to vector<4x128xf32>
    %221 = arith.subf %210, %220 : vector<4x128xf32>
    %222 = arith.mulf %221, %221 : vector<4x128xf32>
    %223 = arith.addf %158, %222 : vector<4x128xf32>
    %224 = arith.mulf %216, %216 : vector<4x128xf32>
    %225 = arith.addf %223, %224 : vector<4x128xf32>
    %cst_27 = arith.constant 0.000000e+00 : f32
    %226 = vector.broadcast %cst_27 : f32 to vector<4x128xf32>
    %cst_28 = arith.constant 0.000000e+00 : f32
    %227 = vector.broadcast %cst_28 : f32 to vector<4x128xf32>
    %228 = vector.extract_strided_slice %82 {offsets = [2, 0], sizes = [1, 128], strides = [1, 1]} : vector<4x128xf32> to vector<1x128xf32>
    %229 = vector.extract_strided_slice %86 {offsets = [2, 0], sizes = [1, 128], strides = [1, 1]} : vector<4x128xf32> to vector<1x128xf32>
    %230 = vector.broadcast %228 : vector<1x128xf32> to vector<4x128xf32>
    %231 = arith.mulf %82, %230 : vector<4x128xf32>
    %232 = arith.addf %226, %231 : vector<4x128xf32>
    %233 = vector.broadcast %229 : vector<1x128xf32> to vector<4x128xf32>
    %234 = arith.mulf %86, %233 : vector<4x128xf32>
    %235 = arith.addf %232, %234 : vector<4x128xf32>
    %236 = vector.broadcast %228 : vector<1x128xf32> to vector<4x128xf32>
    %237 = arith.mulf %86, %236 : vector<4x128xf32>
    %238 = arith.addf %227, %237 : vector<4x128xf32>
    %239 = vector.broadcast %229 : vector<1x128xf32> to vector<4x128xf32>
    %240 = arith.mulf %82, %239 : vector<4x128xf32>
    %241 = arith.subf %238, %240 : vector<4x128xf32>
    %242 = vector.extract_strided_slice %83 {offsets = [2, 0], sizes = [1, 128], strides = [1, 1]} : vector<4x128xf32> to vector<1x128xf32>
    %243 = vector.extract_strided_slice %87 {offsets = [2, 0], sizes = [1, 128], strides = [1, 1]} : vector<4x128xf32> to vector<1x128xf32>
    %244 = vector.broadcast %242 : vector<1x128xf32> to vector<4x128xf32>
    %245 = arith.mulf %83, %244 : vector<4x128xf32>
    %246 = arith.addf %235, %245 : vector<4x128xf32>
    %247 = vector.broadcast %243 : vector<1x128xf32> to vector<4x128xf32>
    %248 = arith.mulf %87, %247 : vector<4x128xf32>
    %249 = arith.addf %246, %248 : vector<4x128xf32>
    %250 = vector.broadcast %242 : vector<1x128xf32> to vector<4x128xf32>
    %251 = arith.mulf %87, %250 : vector<4x128xf32>
    %252 = arith.addf %241, %251 : vector<4x128xf32>
    %253 = vector.broadcast %243 : vector<1x128xf32> to vector<4x128xf32>
    %254 = arith.mulf %83, %253 : vector<4x128xf32>
    %255 = arith.subf %252, %254 : vector<4x128xf32>
    %256 = vector.extract_strided_slice %84 {offsets = [2, 0], sizes = [1, 128], strides = [1, 1]} : vector<4x128xf32> to vector<1x128xf32>
    %257 = vector.extract_strided_slice %88 {offsets = [2, 0], sizes = [1, 128], strides = [1, 1]} : vector<4x128xf32> to vector<1x128xf32>
    %258 = vector.broadcast %256 : vector<1x128xf32> to vector<4x128xf32>
    %259 = arith.mulf %84, %258 : vector<4x128xf32>
    %260 = arith.addf %249, %259 : vector<4x128xf32>
    %261 = vector.broadcast %257 : vector<1x128xf32> to vector<4x128xf32>
    %262 = arith.mulf %88, %261 : vector<4x128xf32>
    %263 = arith.addf %260, %262 : vector<4x128xf32>
    %264 = vector.broadcast %256 : vector<1x128xf32> to vector<4x128xf32>
    %265 = arith.mulf %88, %264 : vector<4x128xf32>
    %266 = arith.addf %255, %265 : vector<4x128xf32>
    %267 = vector.broadcast %257 : vector<1x128xf32> to vector<4x128xf32>
    %268 = arith.mulf %84, %267 : vector<4x128xf32>
    %269 = arith.subf %266, %268 : vector<4x128xf32>
    %270 = vector.extract_strided_slice %85 {offsets = [2, 0], sizes = [1, 128], strides = [1, 1]} : vector<4x128xf32> to vector<1x128xf32>
    %271 = vector.extract_strided_slice %89 {offsets = [2, 0], sizes = [1, 128], strides = [1, 1]} : vector<4x128xf32> to vector<1x128xf32>
    %272 = vector.broadcast %270 : vector<1x128xf32> to vector<4x128xf32>
    %273 = arith.mulf %85, %272 : vector<4x128xf32>
    %274 = arith.addf %263, %273 : vector<4x128xf32>
    %275 = vector.broadcast %271 : vector<1x128xf32> to vector<4x128xf32>
    %276 = arith.mulf %89, %275 : vector<4x128xf32>
    %277 = arith.addf %274, %276 : vector<4x128xf32>
    %278 = vector.broadcast %270 : vector<1x128xf32> to vector<4x128xf32>
    %279 = arith.mulf %89, %278 : vector<4x128xf32>
    %280 = arith.addf %269, %279 : vector<4x128xf32>
    %281 = vector.broadcast %271 : vector<1x128xf32> to vector<4x128xf32>
    %282 = arith.mulf %85, %281 : vector<4x128xf32>
    %283 = arith.subf %280, %282 : vector<4x128xf32>
    %c2_i32_29 = arith.constant 2 : i32
    %284 = vector.broadcast %c2_i32_29 : i32 to vector<4x128xi32>
    %285 = arith.cmpi eq, %90, %284 : vector<4x128xi32>
    %286 = arith.extui %285 : vector<4x128xi1> to vector<4x128xi32>
    %287 = arith.sitofp %286 : vector<4x128xi32> to vector<4x128xf32>
    %288 = arith.subf %277, %287 : vector<4x128xf32>
    %289 = arith.mulf %288, %288 : vector<4x128xf32>
    %290 = arith.addf %225, %289 : vector<4x128xf32>
    %291 = arith.mulf %283, %283 : vector<4x128xf32>
    %292 = arith.addf %290, %291 : vector<4x128xf32>
    %cst_30 = arith.constant 0.000000e+00 : f32
    %293 = vector.broadcast %cst_30 : f32 to vector<4x128xf32>
    %cst_31 = arith.constant 0.000000e+00 : f32
    %294 = vector.broadcast %cst_31 : f32 to vector<4x128xf32>
    %295 = vector.extract_strided_slice %82 {offsets = [3, 0], sizes = [1, 128], strides = [1, 1]} : vector<4x128xf32> to vector<1x128xf32>
    %296 = vector.extract_strided_slice %86 {offsets = [3, 0], sizes = [1, 128], strides = [1, 1]} : vector<4x128xf32> to vector<1x128xf32>
    %297 = vector.broadcast %295 : vector<1x128xf32> to vector<4x128xf32>
    %298 = arith.mulf %82, %297 : vector<4x128xf32>
    %299 = arith.addf %293, %298 : vector<4x128xf32>
    %300 = vector.broadcast %296 : vector<1x128xf32> to vector<4x128xf32>
    %301 = arith.mulf %86, %300 : vector<4x128xf32>
    %302 = arith.addf %299, %301 : vector<4x128xf32>
    %303 = vector.broadcast %295 : vector<1x128xf32> to vector<4x128xf32>
    %304 = arith.mulf %86, %303 : vector<4x128xf32>
    %305 = arith.addf %294, %304 : vector<4x128xf32>
    %306 = vector.broadcast %296 : vector<1x128xf32> to vector<4x128xf32>
    %307 = arith.mulf %82, %306 : vector<4x128xf32>
    %308 = arith.subf %305, %307 : vector<4x128xf32>
    %309 = vector.extract_strided_slice %83 {offsets = [3, 0], sizes = [1, 128], strides = [1, 1]} : vector<4x128xf32> to vector<1x128xf32>
    %310 = vector.extract_strided_slice %87 {offsets = [3, 0], sizes = [1, 128], strides = [1, 1]} : vector<4x128xf32> to vector<1x128xf32>
    %311 = vector.broadcast %309 : vector<1x128xf32> to vector<4x128xf32>
    %312 = arith.mulf %83, %311 : vector<4x128xf32>
    %313 = arith.addf %302, %312 : vector<4x128xf32>
    %314 = vector.broadcast %310 : vector<1x128xf32> to vector<4x128xf32>
    %315 = arith.mulf %87, %314 : vector<4x128xf32>
    %316 = arith.addf %313, %315 : vector<4x128xf32>
    %317 = vector.broadcast %309 : vector<1x128xf32> to vector<4x128xf32>
    %318 = arith.mulf %87, %317 : vector<4x128xf32>
    %319 = arith.addf %308, %318 : vector<4x128xf32>
    %320 = vector.broadcast %310 : vector<1x128xf32> to vector<4x128xf32>
    %321 = arith.mulf %83, %320 : vector<4x128xf32>
    %322 = arith.subf %319, %321 : vector<4x128xf32>
    %323 = vector.extract_strided_slice %84 {offsets = [3, 0], sizes = [1, 128], strides = [1, 1]} : vector<4x128xf32> to vector<1x128xf32>
    %324 = vector.extract_strided_slice %88 {offsets = [3, 0], sizes = [1, 128], strides = [1, 1]} : vector<4x128xf32> to vector<1x128xf32>
    %325 = vector.broadcast %323 : vector<1x128xf32> to vector<4x128xf32>
    %326 = arith.mulf %84, %325 : vector<4x128xf32>
    %327 = arith.addf %316, %326 : vector<4x128xf32>
    %328 = vector.broadcast %324 : vector<1x128xf32> to vector<4x128xf32>
    %329 = arith.mulf %88, %328 : vector<4x128xf32>
    %330 = arith.addf %327, %329 : vector<4x128xf32>
    %331 = vector.broadcast %323 : vector<1x128xf32> to vector<4x128xf32>
    %332 = arith.mulf %88, %331 : vector<4x128xf32>
    %333 = arith.addf %322, %332 : vector<4x128xf32>
    %334 = vector.broadcast %324 : vector<1x128xf32> to vector<4x128xf32>
    %335 = arith.mulf %84, %334 : vector<4x128xf32>
    %336 = arith.subf %333, %335 : vector<4x128xf32>
    %337 = vector.extract_strided_slice %85 {offsets = [3, 0], sizes = [1, 128], strides = [1, 1]} : vector<4x128xf32> to vector<1x128xf32>
    %338 = vector.extract_strided_slice %89 {offsets = [3, 0], sizes = [1, 128], strides = [1, 1]} : vector<4x128xf32> to vector<1x128xf32>
    %339 = vector.broadcast %337 : vector<1x128xf32> to vector<4x128xf32>
    %340 = arith.mulf %85, %339 : vector<4x128xf32>
    %341 = arith.addf %330, %340 : vector<4x128xf32>
    %342 = vector.broadcast %338 : vector<1x128xf32> to vector<4x128xf32>
    %343 = arith.mulf %89, %342 : vector<4x128xf32>
    %344 = arith.addf %341, %343 : vector<4x128xf32>
    %345 = vector.broadcast %337 : vector<1x128xf32> to vector<4x128xf32>
    %346 = arith.mulf %89, %345 : vector<4x128xf32>
    %347 = arith.addf %336, %346 : vector<4x128xf32>
    %348 = vector.broadcast %338 : vector<1x128xf32> to vector<4x128xf32>
    %349 = arith.mulf %85, %348 : vector<4x128xf32>
    %350 = arith.subf %347, %349 : vector<4x128xf32>
    %c3_i32_32 = arith.constant 3 : i32
    %351 = vector.broadcast %c3_i32_32 : i32 to vector<4x128xi32>
    %352 = arith.cmpi eq, %90, %351 : vector<4x128xi32>
    %353 = arith.extui %352 : vector<4x128xi1> to vector<4x128xi32>
    %354 = arith.sitofp %353 : vector<4x128xi32> to vector<4x128xf32>
    %355 = arith.subf %344, %354 : vector<4x128xf32>
    %356 = arith.mulf %355, %355 : vector<4x128xf32>
    %357 = arith.addf %292, %356 : vector<4x128xf32>
    %358 = arith.mulf %350, %350 : vector<4x128xf32>
    %359 = arith.addf %357, %358 : vector<4x128xf32>
    %cst_33 = arith.constant dense<0.000000e+00> : vector<128xf32>
    %360 = vector.multi_reduction <add>, %359, %cst_33 [0] : vector<4x128xf32> to vector<128xf32>
    %361 = vector.shape_cast %360 : vector<128xf32> to vector<1x128xf32>
    %c0_34 = arith.constant 0 : index
    %c0_35 = arith.constant 0 : index
    %362 = vector.load %arg3[%c0_34, %c0_35] : memref<1x128xf32, #tpu.memory_space<vmem>>, vector<1x128xf32>
    tpu.vector_store %arg3[%c0_34, %c0_35], %361 {strides = array<i32>} : memref<1x128xf32, #tpu.memory_space<vmem>>, vector<1x128xf32>,
    return
  }
  func.func @transform_0(%arg0: i32) -> (i32, i32) {
    %c0_i32 = arith.constant 0 : i32
    %c0_i32_0 = arith.constant 0 : i32
    return %c0_i32, %arg0 : i32, i32
  }
  func.func @transform_1(%arg0: i32) -> (i32, i32) {
    %c0_i32 = arith.constant 0 : i32
    %c0_i32_0 = arith.constant 0 : i32
    %c0_i32_1 = arith.constant 0 : i32
    return %c0_i32, %c0_i32_0 : i32, i32
  }
  func.func @transform_2(%arg0: i32) -> (i32, i32) {
    %c0_i32 = arith.constant 0 : i32
    %c0_i32_0 = arith.constant 0 : i32
    return %c0_i32, %arg0 : i32, i32
  }
}

</mosaic_0001>

<llo_original>
// kernel: neg.1
$region0: #{neg.1}
  #allocation0 [shape = 's32[1]{0}', space=sflag, size = 0x4, scoped, tag = 'scoped memory for neg.1']
  %s0 = inlined_call_operand.vmem [shape: f32[16,32], index: 0, kind: input, shape index: {}]
  %s1 = inlined_call_operand.vmem [shape: f32[16,32], index: 1, kind: output, shape index: {}]
  %v2 = vld [vmem:[%s0] sm:$0xff]
  %3 = xla_tuple %v2
  %4 = xla_tuple %3
  %v5 = vxor.u32 %v2, 2147483648
  %6 = xla_tuple %v5
  %7 = vst [vmem:[%s1] sm:$0xff] %v5
  %s8 = scalar_lea.vmem %s0, 8
  %v9 = vld [vmem:[%s8] sm:$0xff]
  %10 = xla_tuple %v9
  %11 = xla_tuple %10
  %v12 = vxor.u32 %v9, 2147483648
  %13 = xla_tuple %v12
  %s14 = scalar_lea.vmem %s1, 8
  %15 = vst [vmem:[%s14] sm:$0xff] %v12

// kernel: _transversal_loss_batched.1
$region0: #{_transversal_loss_batched.1}
  #allocation0 [shape = 'u32[]', space=smem, size = 0x4, offset = 0x4, fixed_abs, tag = 'smem constant byte address 0x4 - core index']
  #allocation1 [shape = 'u32[72,128]{1,0:T(1,128)}', space=vmem, size = 0x9000, scoped, tag = 'internal scratch']
  %s0 = inlined_call_operand.vmem [shape: f32[5,256], index: 0, kind: input, shape index: {}]
  %s1 = inlined_call_operand.vmem [shape: f32[32,64], index: 1, kind: input, shape index: {}]
  %s2 = inlined_call_operand.hbm [shape: f32[1,256], index: 2, kind: output, shape index: {}]
  %s3 = sld [smem:[#allocation0]]
  $region41: #{_transversal_loss_batched.1} parent=0
    _
  %s5 = ssub.s32 1, %s3
  %s6 = scalar_select 0, %s5, %s3
  $region1: #{_transversal_loss_batched.1} parent=0
    #allocation2 [shape = 'u8[1024]{0}', space=vmem, size = 0x400, scoped, tag = 'output window, operand 0']
    #allocation3 [shape = 's32[2]{0}', space=sflag, size = 0x8, scoped, tag = 'scoped memory for _transversal_loss_batched.1']
    %7 = vsyncpa [#allocation3], 0
    %s8 = scalar_lea.sflag [#allocation3], 1
    %9 = vsyncpa %s8, 0
    loop: start=0, step=1, limit=4
    $region2: #{_transversal_loss_batched.1} parent=1 // loop_pre_header
      _
    $region3: #{_transversal_loss_batched.1} parent=1 // loop_header
      %s11 = sphi 0, %s15
      %p12 = scmp.ge.s32.totalorder %s11, 4
      %s21 = sphi 0, %s23
      %s24 = sphi 0, %s21
      %s25 = sphi 0, %s24
      %s41 = sphi 0, %s25
      %s45 = sphi 0, %s45
      %s47 = sphi 0, %s45
      %s48 = sphi 0, %s47
      %s62 = sphi 0, %s48
      %s68 = sphi 0, %s70
      %s71 = sphi 0, %s68
      %s72 = sphi 0, %s71
      %s88 = sphi 0, %s72
    $region4: #{_transversal_loss_batched.1} parent=1 // loop_header_branch
      %14 = sbr.rel (%p12) target = $region8
    $region5: #{_transversal_loss_batched.1} parent=1 // loop_body
      %s16 = ssub.s32 %s11, 1
      %s17 = ssub.s32 %s11, 2
      %s18 = sadd.s32 %s11, 1
      %s19 = ssub.s32 %s11, %s18
      %p20 = scmp.eq.s32.totalorder %s19, 0
      %s22 = sadd.s32 %s21, 1
      %s23 = scalar_select %p20, %s21, %s22
      %p26 = pneg %p20
      %p27 = scmp.eq.s32.totalorder %s11, 1
      %p28 = por %p26, %p27
      %p29 = scmp.ne.s32.totalorder %s21, %s24
      %p30 = scmp.eq.s32.totalorder %s11, 0
      %p31 = por %p29, %p30
      %p32 = scmp.ne.s32.totalorder %s21, %s24
      %p33 = scmp.eq.s32.totalorder %s16, 1
      %p34 = por %p32, %p33
      %p35 = scmp.ne.s32.totalorder %s24, %s25
      %p36 = scmp.eq.s32.totalorder %s16, 0
      %p37 = por %p35, %p36
      %p38 = scmp.ne.s32.totalorder %s24, %s25
      %p39 = scmp.eq.s32.totalorder %s17, 1
      %p40 = por %p38, %p39
      %p42 = scmp.ne.s32.totalorder %s25, %s41
      %p43 = scmp.eq.s32.totalorder %s17, 0
      %p44 = por %p42, %p43
      %s46 = sadd.s32 %s45, 1
      %p49 = scmp.eq.s32.totalorder %s11, 1
      %p50 = scmp.ne.s32.totalorder %s45, %s47
      %p51 = scmp.eq.s32.totalorder %s11, 0
      %p52 = por %p50, %p51
      %p53 = scmp.ne.s32.totalorder %s45, %s47
      %p54 = scmp.eq.s32.totalorder %s16, 1
      %p55 = por %p53, %p54
      %p56 = scmp.ne.s32.totalorder %s47, %s48
      %p57 = scmp.eq.s32.totalorder %s16, 0
      %p58 = por %p56, %p57
      %p59 = scmp.ne.s32.totalorder %s47, %s48
      %p60 = scmp.eq.s32.totalorder %s17, 1
      %p61 = por %p59, %p60
      %p63 = scmp.ne.s32.totalorder %s48, %s62
      %p64 = scmp.eq.s32.totalorder %s17, 0
      %p65 = por %p63, %p64
      %s66 = ssub.s32 %s11, %s18
      %p67 = scmp.eq.s32.totalorder %s66, 0
      %s69 = sadd.s32 %s68, 1
      %s70 = scalar_select %p67, %s68, %s69
      %p73 = pneg %p67
      %p74 = scmp.eq.s32.totalorder %s11, 1
      %p75 = por %p73, %p74
      %p76 = scmp.ne.s32.totalorder %s68, %s71
      %p77 = scmp.eq.s32.totalorder %s11, 0
      %p78 = por %p76, %p77
      %p79 = scmp.ne.s32.totalorder %s68, %s71
      %p80 = scmp.eq.s32.totalorder %s16, 1
      %p81 = por %p79, %p80
      %p82 = scmp.ne.s32.totalorder %s71, %s72
      %p83 = scmp.eq.s32.totalorder %s16, 0
      %p84 = por %p82, %p83
      %p85 = scmp.ne.s32.totalorder %s71, %s72
      %p86 = scmp.eq.s32.totalorder %s17, 1
      %p87 = por %p85, %p86
      %p89 = scmp.ne.s32.totalorder %s72, %s88
      %p90 = scmp.eq.s32.totalorder %s17, 0
      %p91 = por %p89, %p90
      %p92 = scmp.le.s32.totalorder 1, %s11
      %p93 = scmp.lt.s32.totalorder %s11, 3
      %p94 = pnand %p92, %p93
      %p95 = pneg %p94
      // Predicated region
      $region9: #{_transversal_loss_batched.1} parent=5 // pred_check
        _
      $region10: #{_transversal_loss_batched.1} parent=5 // pred_check_branch
        %97 = sbr.rel (%p94) target = $region12
      $region11: #{_transversal_loss_batched.1} parent=5 // pred_region
        %s98 = ssub.s32 %s11, 1
        // Predicated region
        $region13: #{_transversal_loss_batched.1} parent=11 // pred_check
          %p99 = pneg %p58
        $region14: #{_transversal_loss_batched.1} parent=11 // pred_check_branch
          %101 = sbr.rel (%p99) target = $region16
        $region15: #{_transversal_loss_batched.1} parent=11 // pred_region
          _
        $region16: #{_transversal_loss_batched.1} parent=11 // pred_fallthru
          _
      $region12: #{_transversal_loss_batched.1} parent=5 // pred_fallthru
        _
      %p102 = scmp.lt.s32.totalorder %s11, 2
      // Predicated region
      $region17: #{_transversal_loss_batched.1} parent=5 // pred_check
        %p103 = pneg %p102
      $region18: #{_transversal_loss_batched.1} parent=5 // pred_check_branch
        %105 = sbr.rel (%p103) target = $region20
      $region19: #{_transversal_loss_batched.1} parent=5 // pred_region
        // Predicated region
        $region21: #{_transversal_loss_batched.1} parent=19 // pred_check
          %p106 = pneg %p31
        $region22: #{_transversal_loss_batched.1} parent=19 // pred_check_branch
          %108 = sbr.rel (%p106) target = $region24
        $region23: #{_transversal_loss_batched.1} parent=19 // pred_region
          %p109 = scmp.lt.s32.totalorder %s11, 1
          %s110 = scalar_select %p109, %s11, 1
          %s111 = smul.addr %s110, 8
          %s112 = scalar_lea.vmem %s0, %s111
        $region24: #{_transversal_loss_batched.1} parent=19 // pred_fallthru
          _
      $region20: #{_transversal_loss_batched.1} parent=5 // pred_fallthru
        _
      %p113 = scmp.le.s32.totalorder 1, %s11
      %p114 = scmp.lt.s32.totalorder %s11, 3
      %p115 = pnand %p113, %p114
      %p116 = pneg %p115
      // Predicated region
      $region25: #{_transversal_loss_batched.1} parent=5 // pred_check
        _
      $region26: #{_transversal_loss_batched.1} parent=5 // pred_check_branch
        %118 = sbr.rel (%p115) target = $region28
      $region27: #{_transversal_loss_batched.1} parent=5 // pred_region
        %s119 = ssub.s32 %s11, 1
        %p120 = scmp.lt.s32.totalorder %s16, 1
        %s121 = scalar_select %p120, %s16, 1
        %s122 = smul.addr %s121, 8
        %s123 = scalar_lea.vmem %s0, %s122
        %p124 = pneg %p37
        %p125 = pneg %p34
        %p126 = pneg %p58
        %p127 = pneg %p55
        %p128 = pneg %p84
        %p129 = pneg %p81
        %s130 = sand.u32 %s71, 1
        %s131 = scalar_lea.sflag [#allocation3], %s130
        %s132 = sand.u32 %s71, 1
        %s133 = scalar_lea.vmem [#allocation2], %s132
        %p134 = scmp.lt.s32.totalorder %s16, 1
        %s135 = scalar_select %p134, %s16, 1
        %s136 = smul.addr %s135, 8
        %s137 = scalar_lea.vmem %s0, %s136
        %v138 = vld [vmem:[%s137] sm:$0x1f]
        %v139 = vld [vmem:[%s1] sm:$0xff]
        %v140 = vld [vmem:[%s1 + $0x8] sm:$0xff]
        %v141 = vld [vmem:[%s1 + $0x10] sm:$0xff]
        %v142 = vld [vmem:[%s1 + $0x18] sm:$0xff]
        %v143 = vlaneseq
        %v144 = vshrl.u32 %v143, 7
        %v145 = vadd.s32 %v144, 8
        %v146 = vadd.s32 %v144, 16
        %v147 = vadd.s32 %v144, 24
        %v148 = vshra.s32 %v144, 4
        %v149 = vshra.s32 %v145, 4
        %v150 = vshra.s32 %v146, 4
        %v151 = vshra.s32 %v147, 4
        %v152 = vand.u32 %v148, 1
        %v153 = vand.u32 %v149, 1
        %v154 = vand.u32 %v150, 1
        %v155 = vand.u32 %v151, 1
        %v156 = vmul.u32 %v152, 2
        %v157 = vmul.u32 %v153, 2
        %v158 = vmul.u32 %v154, 2
        %v159 = vmul.u32 %v155, 2
        %v160 = vsub.s32 %v156, 1
        %v161 = vsub.s32 %v157, 1
        %v162 = vsub.s32 %v158, 1
        %v163 = vsub.s32 %v159, 1
        %v164 = vcvt.s32.f32 %v160
        %v165 = vcvt.s32.f32 %v161
        %v166 = vcvt.s32.f32 %v162
        %v167 = vcvt.s32.f32 %v163
        %v168 = vperm.slane %v138, 0
        %v169 = vmul.f32 %v164, %v168
        %v170 = vmul.f32 %v165, %v168
        %v171 = vmul.f32 %v166, %v168
        %v172 = vmul.f32 %v167, %v168
        %v173 = vadd.f32 %v169, 0.0
        %v174 = vadd.f32 %v170, 0.0
        %v175 = vadd.f32 %v171, 0.0
        %v176 = vadd.f32 %v172, 0.0
        %v177 = vshra.s32 %v144, 3
        %v178 = vshra.s32 %v145, 3
        %v179 = vshra.s32 %v146, 3
        %v180 = vshra.s32 %v147, 3
        %v181 = vand.u32 %v177, 1
        %v182 = vand.u32 %v178, 1
        %v183 = vand.u32 %v179, 1
        %v184 = vand.u32 %v180, 1
        %v185 = vmul.u32 %v181, 2
        %v186 = vmul.u32 %v182, 2
        %v187 = vmul.u32 %v183, 2
        %v188 = vmul.u32 %v184, 2
        %v189 = vsub.s32 %v185, 1
        %v190 = vsub.s32 %v186, 1
        %v191 = vsub.s32 %v187, 1
        %v192 = vsub.s32 %v188, 1
        %v193 = vcvt.s32.f32 %v189
        %v194 = vcvt.s32.f32 %v190
        %v195 = vcvt.s32.f32 %v191
        %v196 = vcvt.s32.f32 %v192
        %v197 = vperm.slane %v138, 1
        %v198 = vmul.f32 %v193, %v197
        %v199 = vmul.f32 %v194, %v197
        %v200 = vmul.f32 %v195, %v197
        %v201 = vmul.f32 %v196, %v197
        %v202 = vadd.f32 %v173, %v198
        %v203 = vadd.f32 %v174, %v199
        %v204 = vadd.f32 %v175, %v200
        %v205 = vadd.f32 %v176, %v201
        %v206 = vshra.s32 %v144, 2
        %v207 = vshra.s32 %v145, 2
        %v208 = vshra.s32 %v146, 2
        %v209 = vshra.s32 %v147, 2
        %v210 = vand.u32 %v206, 1
        %v211 = vand.u32 %v207, 1
        %v212 = vand.u32 %v208, 1
        %v213 = vand.u32 %v209, 1
        %v214 = vmul.u32 %v210, 2
        %v215 = vmul.u32 %v211, 2
        %v216 = vmul.u32 %v212, 2
        %v217 = vmul.u32 %v213, 2
        %v218 = vsub.s32 %v214, 1
        %v219 = vsub.s32 %v215, 1
        %v220 = vsub.s32 %v216, 1
        %v221 = vsub.s32 %v217, 1
        %v222 = vcvt.s32.f32 %v218
        %v223 = vcvt.s32.f32 %v219
        %v224 = vcvt.s32.f32 %v220
        %v225 = vcvt.s32.f32 %v221
        %v226 = vperm.slane %v138, 2
        %v227 = vmul.f32 %v222, %v226
        %v228 = vmul.f32 %v223, %v226
        %v229 = vmul.f32 %v224, %v226
        %v230 = vmul.f32 %v225, %v226
        %v231 = vadd.f32 %v202, %v227
        %v232 = vadd.f32 %v203, %v228
        %v233 = vadd.f32 %v204, %v229
        %v234 = vadd.f32 %v205, %v230
        %v235 = vshra.s32 %v144, 1
        %v236 = vshra.s32 %v145, 1
        %v237 = vshra.s32 %v146, 1
        %v238 = vshra.s32 %v147, 1
        %v239 = vand.u32 %v235, 1
        %v240 = vand.u32 %v236, 1
        %v241 = vand.u32 %v237, 1
        %v242 = vand.u32 %v238, 1
        %v243 = vmul.u32 %v239, 2
        %v244 = vmul.u32 %v240, 2
        %v245 = vmul.u32 %v241, 2
        %v246 = vmul.u32 %v242, 2
        %v247 = vsub.s32 %v243, 1
        %v248 = vsub.s32 %v244, 1
        %v249 = vsub.s32 %v245, 1
        %v250 = vsub.s32 %v246, 1
        %v251 = vcvt.s32.f32 %v247
        %v252 = vcvt.s32.f32 %v248
        %v253 = vcvt.s32.f32 %v249
        %v254 = vcvt.s32.f32 %v250
        %v255 = vperm.slane %v138, 3
        %v256 = vmul.f32 %v251, %v255
        %v257 = vmul.f32 %v252, %v255
        %v258 = vmul.f32 %v253, %v255
        %v259 = vmul.f32 %v254, %v255
        %v260 = vadd.f32 %v231, %v256
        %v261 = vadd.f32 %v232, %v257
        %v262 = vadd.f32 %v233, %v258
        %v263 = vadd.f32 %v234, %v259
        %v264 = vand.u32 %v144, 1
        %v265 = vand.u32 %v145, 1
        %v266 = vand.u32 %v146, 1
        %v267 = vand.u32 %v147, 1
        %v268 = vmul.u32 %v264, 2
        %v269 = vmul.u32 %v265, 2
        %v270 = vmul.u32 %v266, 2
        %v271 = vmul.u32 %v267, 2
        %v272 = vsub.s32 %v268, 1
        %v273 = vsub.s32 %v269, 1
        %v274 = vsub.s32 %v270, 1
        %v275 = vsub.s32 %v271, 1
        %v276 = vcvt.s32.f32 %v272
        %v277 = vcvt.s32.f32 %v273
        %v278 = vcvt.s32.f32 %v274
        %v279 = vcvt.s32.f32 %v275
        %v280 = vperm.slane %v138, 4
        %v281 = vmul.f32 %v276, %v280
        %v282 = vmul.f32 %v277, %v280
        %v283 = vmul.f32 %v278, %v280
        %v284 = vmul.f32 %v279, %v280
        %v285 = vadd.f32 %v260, %v281
        %v286 = vadd.f32 %v261, %v282
        %v287 = vadd.f32 %v262, %v283
        %v288 = vadd.f32 %v263, %v284
        %v289 = vmul.f32 %v285, 0.5
        %v290 = vmul.f32 %v286, 0.5
        %v291 = vmul.f32 %v287, 0.5
        %v292 = vmul.f32 %v288, 0.5
        %v293 = vand.u32 2147483647, %v289
        %vm294 = vcmp.le.f32.partialorder %v293, 0.7853982
        %vm295 = vcmp.lt.s32.totalorder %v289, 0
        %v296 = vand.u32 %v289, 2139095040
        %v297 = vshrl.u32 %v296, 23
        %v298 = vsub.s32 %v297, 127
        %v299 = vand.u32 2147483647, %v289
        %v300 = vand.u32 %v299, 8388607
        %v301 = vor.u32 %v300, 8388608
        %v302 = vsub.s32 0, %v301
        %v303 = vadd.s32 %v298, 1
        %vm304 = vcmp.gt.s32.totalorder %v303, 0
        %v305 = vsel %vm304, %v303, 0
        %v306 = vshrl.u32 %v305, 5
        %v307 = vand.u32 %v305, 31
        %v308 = vsub.s32 32, %v307
        %v309 = vshrl.u32 683565275, %v308
        %v310 = vshll.u32 683565275, %v307
        %v311 = vshrl.u32 2475754826, %v308
        %v312 = vor.u32 %v310, %v311
        %v313 = vshll.u32 2475754826, %v307
        %v314 = vshrl.u32 2131351028, %v308
        %v315 = vor.u32 %v313, %v314
        %v316 = vshll.u32 2131351028, %v307
        %v317 = vshrl.u32 2102212464, %v308
        %v318 = vor.u32 %v316, %v317
        %v319 = vshll.u32 2102212464, %v307
        %v320 = vshrl.u32 920167782, %v308
        %v321 = vor.u32 %v319, %v320
        %v322 = vshll.u32 920167782, %v307
        %v323 = vshrl.u32 1326507024, %v308
        %v324 = vor.u32 %v322, %v323
        %vm325 = vcmp.lt.s32.totalorder %v306, 1
        %vm326 = vcmp.lt.s32.totalorder %v306, 2
        %vm327 = vcmp.lt.s32.totalorder %v306, 3
        %vm328 = vcmp.lt.s32.totalorder %v306, 4
        %v329 = vsel %vm325, %v309, %v312
        %v330 = vsel %vm328, %v318, 2102212464
        %v331 = vsel %vm327, %v315, %v330
        %v332 = vsel %vm326, %v329, %v331
        %v333 = vsel %vm325, %v312, %v315
        %v334 = vsel %vm328, %v321, 920167782
        %v335 = vsel %vm327, %v318, %v334
        %v336 = vsel %vm326, %v333, %v335
        %v337 = vsel %vm325, %v315, %v318
        %v338 = vsel %vm328, %v324, 1326507024
        %v339 = vsel %vm327, %v321, %v338
        %v340 = vsel %vm326, %v337, %v339
        %v341 = vshll.u32 %v301, 8
        %v342 = vand.u32 %v341, 65535
        %v343 = vshrl.u32 %v341, 16
        %v344 = vand.u32 %v340, 65535
        %v345 = vshrl.u32 %v340, 16
        %v346 = vmul.u32 %v342, %v344
        %v347 = vmul.u32 %v342, %v345
        %v348 = vmul.u32 %v343, %v344
        %v349 = vmul.u32 %v343, %v345
        %v350 = vshll.u32 %v347, 16
        %v351 = vshrl.u32 %v347, 16
        %v352 = vshll.u32 %v348, 16
        %v353 = vshrl.u32 %v348, 16
        %vm354 = vc.u32 %v346, %v350
        %v355 = vsel %vm354, 1, 0
        %v356 = vadd.s32 %v346, %v350
        %v357 = vadd.s32 %v349, %v355
        %vm358 = vc.u32 %v356, %v352
        %v359 = vsel %vm358, 1, 0
        %v360 = vadd.s32 %v356, %v352
        %v361 = vadd.s32 %v357, %v359
        %v362 = vadd.s32 %v361, %v351
        %v363 = vadd.s32 %v362, %v353
        %v364 = vand.u32 %v341, 65535
        %v365 = vshrl.u32 %v341, 16
        %v366 = vand.u32 %v336, 65535
        %v367 = vshrl.u32 %v336, 16
        %v368 = vmul.u32 %v364, %v366
        %v369 = vmul.u32 %v364, %v367
        %v370 = vmul.u32 %v365, %v366
        %v371 = vmul.u32 %v365, %v367
        %v372 = vshll.u32 %v369, 16
        %v373 = vshrl.u32 %v369, 16
        %v374 = vshll.u32 %v370, 16
        %v375 = vshrl.u32 %v370, 16
        %vm376 = vc.u32 %v368, %v372
        %v377 = vsel %vm376, 1, 0
        %v378 = vadd.s32 %v368, %v372
        %v379 = vadd.s32 %v371, %v377
        %vm380 = vc.u32 %v378, %v374
        %v381 = vsel %vm380, 1, 0
        %v382 = vadd.s32 %v378, %v374
        %v383 = vadd.s32 %v379, %v381
        %v384 = vadd.s32 %v383, %v373
        %v385 = vadd.s32 %v384, %v375
        %v386 = vmul.u32 %v341, %v332
        %v387 = vadd.s32 %v363, %v382
        %vm388 = vc.u32 %v363, %v382
        %v389 = vadd.s32 %v385, 1
        %v390 = vsel %vm388, %v389, %v385
        %v391 = vadd.s32 %v386, %v390
        %v392 = vadd.s32 %v391, 536870912
        %v393 = vshrl.u32 %v392, 30
        %v394 = vshll.u32 %v393, 30
        %v395 = vsub.s32 %v391, %v394
        %vm396 = vcmp.lt.s32.totalorder %v395, 0
        %v397 = vsub.s32 0, %v395
        %v398 = vsel %vm396, %v397, %v395
        %v399 = vclz %v398
        %v400 = vsub.s32 %v399, 2
        %vm401 = vcmp.gt.s32.totalorder 0, %v400
        %v402 = vsel %vm401, 0, %v400
        %v403 = vsub.s32 32, %v402
        %v404 = vshll.u32 %v395, %v402
        %v405 = vshrl.u32 %v387, %v403
        %v406 = vor.u32 %v404, %v405
        %v407 = vsub.s32 4294967266, %v402
        %v408 = vadd.s32 %v407, 127
        %v409 = vshll.u32 %v408, 23
        %v410 = vor.u32 4788187, %v409
        %v411 = vand.u32 2147483647, %v410
        %v413 = vcvt.s32.f32 %v406
        %v414 = vmul.f32 %v413, %v411
        %v415 = vxor.u32 %v414, 2147483648
        %v416 = vsel %vm295, %v415, %v414
        %v417 = vsub.s32 4, %v393
        %v418 = vsel %vm295, %v417, %v393
        %v419 = vsel %vm294, %v289, %v416
        %v420 = vsel %vm294, 0, %v418
        %v421 = vmul.f32 %v419, %v419
        %v422 = vmul.f32 %v421, -0.001358992
        %v423 = vadd.f32 %v422, 0.041655596
        %v424 = vmul.f32 %v421, %v423
        %v425 = vadd.f32 %v424, -0.4999988
        %v426 = vmul.f32 %v421, %v425
        %v427 = vadd.f32 1.0, %v426
        %v428 = vmul.f32 %v419, %v419
        %v429 = vmul.f32 %v428, -0.00019511016
        %v430 = vadd.f32 %v429, 0.008332121
        %v431 = vmul.f32 %v428, %v430
        %v432 = vadd.f32 %v431, -0.16666654
        %v433 = vmul.f32 %v428, %v432
        %v434 = vadd.f32 %v433, 1.0
        %v435 = vmul.f32 %v434, %v419
        %vm436 = vweird.f32 %v289
        %v437 = vand.u32 %v420, 3
        %vm438 = vcmp.lt.s32.totalorder %v437, 2
        %vm439 = vcmp.eq.s32.totalorder %v437, 0
        %v440 = vxor.u32 %v435, 2147483648
        %v441 = vsel %vm439, %v427, %v440
        %vm442 = vcmp.eq.s32.totalorder %v437, 2
        %v443 = vxor.u32 %v427, 2147483648
        %v444 = vsel %vm442, %v443, %v435
        %v445 = vsel %vm438, %v441, %v444
        %v446 = vsel %vm436, nan, %v445
        %v447 = vand.u32 2147483647, %v290
        %vm448 = vcmp.le.f32.partialorder %v447, 0.7853982
        %vm449 = vcmp.lt.s32.totalorder %v290, 0
        %v450 = vand.u32 %v290, 2139095040
        %v451 = vshrl.u32 %v450, 23
        %v452 = vsub.s32 %v451, 127
        %v453 = vand.u32 2147483647, %v290
        %v454 = vand.u32 %v453, 8388607
        %v455 = vor.u32 %v454, 8388608
        %v456 = vsub.s32 0, %v455
        %v457 = vadd.s32 %v452, 1
        %vm458 = vcmp.gt.s32.totalorder %v457, 0
        %v459 = vsel %vm458, %v457, 0
        %v460 = vshrl.u32 %v459, 5
        %v461 = vand.u32 %v459, 31
        %v462 = vsub.s32 32, %v461
        %v463 = vshrl.u32 683565275, %v462
        %v464 = vshll.u32 683565275, %v461
        %v465 = vshrl.u32 2475754826, %v462
        %v466 = vor.u32 %v464, %v465
        %v467 = vshll.u32 2475754826, %v461
        %v468 = vshrl.u32 2131351028, %v462
        %v469 = vor.u32 %v467, %v468
        %v470 = vshll.u32 2131351028, %v461
        %v471 = vshrl.u32 2102212464, %v462
        %v472 = vor.u32 %v470, %v471
        %v473 = vshll.u32 2102212464, %v461
        %v474 = vshrl.u32 920167782, %v462
        %v475 = vor.u32 %v473, %v474
        %v476 = vshll.u32 920167782, %v461
        %v477 = vshrl.u32 1326507024, %v462
        %v478 = vor.u32 %v476, %v477
        %vm479 = vcmp.lt.s32.totalorder %v460, 1
        %vm480 = vcmp.lt.s32.totalorder %v460, 2
        %vm481 = vcmp.lt.s32.totalorder %v460, 3
        %vm482 = vcmp.lt.s32.totalorder %v460, 4
        %v483 = vsel %vm479, %v463, %v466
        %v484 = vsel %vm482, %v472, 2102212464
        %v485 = vsel %vm481, %v469, %v484
        %v486 = vsel %vm480, %v483, %v485
        %v487 = vsel %vm479, %v466, %v469
        %v488 = vsel %vm482, %v475, 920167782
        %v489 = vsel %vm481, %v472, %v488
        %v490 = vsel %vm480, %v487, %v489
        %v491 = vsel %vm479, %v469, %v472
        %v492 = vsel %vm482, %v478, 1326507024
        %v493 = vsel %vm481, %v475, %v492
        %v494 = vsel %vm480, %v491, %v493
        %v495 = vshll.u32 %v455, 8
        %v496 = vand.u32 %v495, 65535
        %v497 = vshrl.u32 %v495, 16
        %v498 = vand.u32 %v494, 65535
        %v499 = vshrl.u32 %v494, 16
        %v500 = vmul.u32 %v496, %v498
        %v501 = vmul.u32 %v496, %v499
        %v502 = vmul.u32 %v497, %v498
        %v503 = vmul.u32 %v497, %v499
        %v504 = vshll.u32 %v501, 16
        %v505 = vshrl.u32 %v501, 16
        %v506 = vshll.u32 %v502, 16
        %v507 = vshrl.u32 %v502, 16
        %vm508 = vc.u32 %v500, %v504
        %v509 = vsel %vm508, 1, 0
        %v510 = vadd.s32 %v500, %v504
        %v511 = vadd.s32 %v503, %v509
        %vm512 = vc.u32 %v510, %v506
        %v513 = vsel %vm512, 1, 0
        %v514 = vadd.s32 %v510, %v506
        %v515 = vadd.s32 %v511, %v513
        %v516 = vadd.s32 %v515, %v505
        %v517 = vadd.s32 %v516, %v507
        %v518 = vand.u32 %v495, 65535
        %v519 = vshrl.u32 %v495, 16
        %v520 = vand.u32 %v490, 65535
        %v521 = vshrl.u32 %v490, 16
        %v522 = vmul.u32 %v518, %v520
        %v523 = vmul.u32 %v518, %v521
        %v524 = vmul.u32 %v519, %v520
        %v525 = vmul.u32 %v519, %v521
        %v526 = vshll.u32 %v523, 16
        %v527 = vshrl.u32 %v523, 16
        %v528 = vshll.u32 %v524, 16
        %v529 = vshrl.u32 %v524, 16
        %vm530 = vc.u32 %v522, %v526
        %v531 = vsel %vm530, 1, 0
        %v532 = vadd.s32 %v522, %v526
        %v533 = vadd.s32 %v525, %v531
        %vm534 = vc.u32 %v532, %v528
        %v535 = vsel %vm534, 1, 0
        %v536 = vadd.s32 %v532, %v528
        %v537 = vadd.s32 %v533, %v535
        %v538 = vadd.s32 %v537, %v527
        %v539 = vadd.s32 %v538, %v529
        %v540 = vmul.u32 %v495, %v486
        %v541 = vadd.s32 %v517, %v536
        %vm542 = vc.u32 %v517, %v536
        %v543 = vadd.s32 %v539, 1
        %v544 = vsel %vm542, %v543, %v539
        %v545 = vadd.s32 %v540, %v544
        %v546 = vadd.s32 %v545, 536870912
        %v547 = vshrl.u32 %v546, 30
        %v548 = vshll.u32 %v547, 30
        %v549 = vsub.s32 %v545, %v548
        %vm550 = vcmp.lt.s32.totalorder %v549, 0
        %v551 = vsub.s32 0, %v549
        %v552 = vsel %vm550, %v551, %v549
        %v553 = vclz %v552
        %v554 = vsub.s32 %v553, 2
        %vm555 = vcmp.gt.s32.totalorder 0, %v554
        %v556 = vsel %vm555, 0, %v554
        %v557 = vsub.s32 32, %v556
        %v558 = vshll.u32 %v549, %v556
        %v559 = vshrl.u32 %v541, %v557
        %v560 = vor.u32 %v558, %v559
        %v561 = vsub.s32 4294967266, %v556
        %v562 = vadd.s32 %v561, 127
        %v563 = vshll.u32 %v562, 23
        %v564 = vor.u32 4788187, %v563
        %v565 = vand.u32 2147483647, %v564
        %v567 = vcvt.s32.f32 %v560
        %v568 = vmul.f32 %v567, %v565
        %v569 = vxor.u32 %v568, 2147483648
        %v570 = vsel %vm449, %v569, %v568
        %v571 = vsub.s32 4, %v547
        %v572 = vsel %vm449, %v571, %v547
        %v573 = vsel %vm448, %v290, %v570
        %v574 = vsel %vm448, 0, %v572
        %v575 = vmul.f32 %v573, %v573
        %v576 = vmul.f32 %v575, -0.001358992
        %v577 = vadd.f32 %v576, 0.041655596
        %v578 = vmul.f32 %v575, %v577
        %v579 = vadd.f32 %v578, -0.4999988
        %v580 = vmul.f32 %v575, %v579
        %v581 = vadd.f32 1.0, %v580
        %v582 = vmul.f32 %v573, %v573
        %v583 = vmul.f32 %v582, -0.00019511016
        %v584 = vadd.f32 %v583, 0.008332121
        %v585 = vmul.f32 %v582, %v584
        %v586 = vadd.f32 %v585, -0.16666654
        %v587 = vmul.f32 %v582, %v586
        %v588 = vadd.f32 %v587, 1.0
        %v589 = vmul.f32 %v588, %v573
        %vm590 = vweird.f32 %v290
        %v591 = vand.u32 %v574, 3
        %vm592 = vcmp.lt.s32.totalorder %v591, 2
        %vm593 = vcmp.eq.s32.totalorder %v591, 0
        %v594 = vxor.u32 %v589, 2147483648
        %v595 = vsel %vm593, %v581, %v594
        %vm596 = vcmp.eq.s32.totalorder %v591, 2
        %v597 = vxor.u32 %v581, 2147483648
        %v598 = vsel %vm596, %v597, %v589
        %v599 = vsel %vm592, %v595, %v598
        %v600 = vsel %vm590, nan, %v599
        %v601 = vand.u32 2147483647, %v291
        %vm602 = vcmp.le.f32.partialorder %v601, 0.7853982
        %vm603 = vcmp.lt.s32.totalorder %v291, 0
        %v604 = vand.u32 %v291, 2139095040
        %v605 = vshrl.u32 %v604, 23
        %v606 = vsub.s32 %v605, 127
        %v607 = vand.u32 2147483647, %v291
        %v608 = vand.u32 %v607, 8388607
        %v609 = vor.u32 %v608, 8388608
        %v610 = vsub.s32 0, %v609
        %v611 = vadd.s32 %v606, 1
        %vm612 = vcmp.gt.s32.totalorder %v611, 0
        %v613 = vsel %vm612, %v611, 0
        %v614 = vshrl.u32 %v613, 5
        %v615 = vand.u32 %v613, 31
        %v616 = vsub.s32 32, %v615
        %v617 = vshrl.u32 683565275, %v616
        %v618 = vshll.u32 683565275, %v615
        %v619 = vshrl.u32 2475754826, %v616
        %v620 = vor.u32 %v618, %v619
        %v621 = vshll.u32 2475754826, %v615
        %v622 = vshrl.u32 2131351028, %v616
        %v623 = vor.u32 %v621, %v622
        %v624 = vshll.u32 2131351028, %v615
        %v625 = vshrl.u32 2102212464, %v616
        %v626 = vor.u32 %v624, %v625
        %v627 = vshll.u32 2102212464, %v615
        %v628 = vshrl.u32 920167782, %v616
        %v629 = vor.u32 %v627, %v628
        %v630 = vshll.u32 920167782, %v615
        %v631 = vshrl.u32 1326507024, %v616
        %v632 = vor.u32 %v630, %v631
        %vm633 = vcmp.lt.s32.totalorder %v614, 1
        %vm634 = vcmp.lt.s32.totalorder %v614, 2
        %vm635 = vcmp.lt.s32.totalorder %v614, 3
        %vm636 = vcmp.lt.s32.totalorder %v614, 4
        %v637 = vsel %vm633, %v617, %v620
        %v638 = vsel %vm636, %v626, 2102212464
        %v639 = vsel %vm635, %v623, %v638
        %v640 = vsel %vm634, %v637, %v639
        %v641 = vsel %vm633, %v620, %v623
        %v642 = vsel %vm636, %v629, 920167782
        %v643 = vsel %vm635, %v626, %v642
        %v644 = vsel %vm634, %v641, %v643
        %v645 = vsel %vm633, %v623, %v626
        %v646 = vsel %vm636, %v632, 1326507024
        %v647 = vsel %vm635, %v629, %v646
        %v648 = vsel %vm634, %v645, %v647
        %v649 = vshll.u32 %v609, 8
        %v650 = vand.u32 %v649, 65535
        %v651 = vshrl.u32 %v649, 16
        %v652 = vand.u32 %v648, 65535
        %v653 = vshrl.u32 %v648, 16
        %v654 = vmul.u32 %v650, %v652
        %v655 = vmul.u32 %v650, %v653
        %v656 = vmul.u32 %v651, %v652
        %v657 = vmul.u32 %v651, %v653
        %v658 = vshll.u32 %v655, 16
        %v659 = vshrl.u32 %v655, 16
        %v660 = vshll.u32 %v656, 16
        %v661 = vshrl.u32 %v656, 16
        %vm662 = vc.u32 %v654, %v658
        %v663 = vsel %vm662, 1, 0
        %v664 = vadd.s32 %v654, %v658
        %v665 = vadd.s32 %v657, %v663
        %vm666 = vc.u32 %v664, %v660
        %v667 = vsel %vm666, 1, 0
        %v668 = vadd.s32 %v664, %v660
        %v669 = vadd.s32 %v665, %v667
        %v670 = vadd.s32 %v669, %v659
        %v671 = vadd.s32 %v670, %v661
        %v672 = vand.u32 %v649, 65535
        %v673 = vshrl.u32 %v649, 16
        %v674 = vand.u32 %v644, 65535
        %v675 = vshrl.u32 %v644, 16
        %v676 = vmul.u32 %v672, %v674
        %v677 = vmul.u32 %v672, %v675
        %v678 = vmul.u32 %v673, %v674
        %v679 = vmul.u32 %v673, %v675
        %v680 = vshll.u32 %v677, 16
        %v681 = vshrl.u32 %v677, 16
        %v682 = vshll.u32 %v678, 16
        %v683 = vshrl.u32 %v678, 16
        %vm684 = vc.u32 %v676, %v680
        %v685 = vsel %vm684, 1, 0
        %v686 = vadd.s32 %v676, %v680
        %v687 = vadd.s32 %v679, %v685
        %vm688 = vc.u32 %v686, %v682
        %v689 = vsel %vm688, 1, 0
        %v690 = vadd.s32 %v686, %v682
        %v691 = vadd.s32 %v687, %v689
        %v692 = vadd.s32 %v691, %v681
        %v693 = vadd.s32 %v692, %v683
        %v694 = vmul.u32 %v649, %v640
        %v695 = vadd.s32 %v671, %v690
        %vm696 = vc.u32 %v671, %v690
        %v697 = vadd.s32 %v693, 1
        %v698 = vsel %vm696, %v697, %v693
        %v699 = vadd.s32 %v694, %v698
        %v700 = vadd.s32 %v699, 536870912
        %v701 = vshrl.u32 %v700, 30
        %v702 = vshll.u32 %v701, 30
        %v703 = vsub.s32 %v699, %v702
        %vm704 = vcmp.lt.s32.totalorder %v703, 0
        %v705 = vsub.s32 0, %v703
        %v706 = vsel %vm704, %v705, %v703
        %v707 = vclz %v706
        %v708 = vsub.s32 %v707, 2
        %vm709 = vcmp.gt.s32.totalorder 0, %v708
        %v710 = vsel %vm709, 0, %v708
        %v711 = vsub.s32 32, %v710
        %v712 = vshll.u32 %v703, %v710
        %v713 = vshrl.u32 %v695, %v711
        %v714 = vor.u32 %v712, %v713
        %v715 = vsub.s32 4294967266, %v710
        %v716 = vadd.s32 %v715, 127
        %v717 = vshll.u32 %v716, 23
        %v718 = vor.u32 4788187, %v717
        %v719 = vand.u32 2147483647, %v718
        %v721 = vcvt.s32.f32 %v714
        %v722 = vmul.f32 %v721, %v719
        %v723 = vxor.u32 %v722, 2147483648
        %v724 = vsel %vm603, %v723, %v722
        %v725 = vsub.s32 4, %v701
        %v726 = vsel %vm603, %v725, %v701
        %v727 = vsel %vm602, %v291, %v724
        %v728 = vsel %vm602, 0, %v726
        %v729 = vmul.f32 %v727, %v727
        %v730 = vmul.f32 %v729, -0.001358992
        %v731 = vadd.f32 %v730, 0.041655596
        %v732 = vmul.f32 %v729, %v731
        %v733 = vadd.f32 %v732, -0.4999988
        %v734 = vmul.f32 %v729, %v733
        %v735 = vadd.f32 1.0, %v734
        %v736 = vmul.f32 %v727, %v727
        %v737 = vmul.f32 %v736, -0.00019511016
        %v738 = vadd.f32 %v737, 0.008332121
        %v739 = vmul.f32 %v736, %v738
        %v740 = vadd.f32 %v739, -0.16666654
        %v741 = vmul.f32 %v736, %v740
        %v742 = vadd.f32 %v741, 1.0
        %v743 = vmul.f32 %v742, %v727
        %vm744 = vweird.f32 %v291
        %v745 = vand.u32 %v728, 3
        %vm746 = vcmp.lt.s32.totalorder %v745, 2
        %vm747 = vcmp.eq.s32.totalorder %v745, 0
        %v748 = vxor.u32 %v743, 2147483648
        %v749 = vsel %vm747, %v735, %v748
        %vm750 = vcmp.eq.s32.totalorder %v745, 2
        %v751 = vxor.u32 %v735, 2147483648
        %v752 = vsel %vm750, %v751, %v743
        %v753 = vsel %vm746, %v749, %v752
        %v754 = vsel %vm744, nan, %v753
        %v755 = vand.u32 2147483647, %v292
        %vm756 = vcmp.le.f32.partialorder %v755, 0.7853982
        %vm757 = vcmp.lt.s32.totalorder %v292, 0
        %v758 = vand.u32 %v292, 2139095040
        %v759 = vshrl.u32 %v758, 23
        %v760 = vsub.s32 %v759, 127
        %v761 = vand.u32 2147483647, %v292
        %v762 = vand.u32 %v761, 8388607
        %v763 = vor.u32 %v762, 8388608
        %v764 = vsub.s32 0, %v763
        %v765 = vadd.s32 %v760, 1
        %vm766 = vcmp.gt.s32.totalorder %v765, 0
        %v767 = vsel %vm766, %v765, 0
        %v768 = vshrl.u32 %v767, 5
        %v769 = vand.u32 %v767, 31
        %v770 = vsub.s32 32, %v769
        %v771 = vshrl.u32 683565275, %v770
        %v772 = vshll.u32 683565275, %v769
        %v773 = vshrl.u32 2475754826, %v770
        %v774 = vor.u32 %v772, %v773
        %v775 = vshll.u32 2475754826, %v769
        %v776 = vshrl.u32 2131351028, %v770
        %v777 = vor.u32 %v775, %v776
        %v778 = vshll.u32 2131351028, %v769
        %v779 = vshrl.u32 2102212464, %v770
        %v780 = vor.u32 %v778, %v779
        %v781 = vshll.u32 2102212464, %v769
        %v782 = vshrl.u32 920167782, %v770
        %v783 = vor.u32 %v781, %v782
        %v784 = vshll.u32 920167782, %v769
        %v785 = vshrl.u32 1326507024, %v770
        %v786 = vor.u32 %v784, %v785
        %vm787 = vcmp.lt.s32.totalorder %v768, 1
        %vm788 = vcmp.lt.s32.totalorder %v768, 2
        %vm789 = vcmp.lt.s32.totalorder %v768, 3
        %vm790 = vcmp.lt.s32.totalorder %v768, 4
        %v791 = vsel %vm787, %v771, %v774
        %v792 = vsel %vm790, %v780, 2102212464
        %v793 = vsel %vm789, %v777, %v792
        %v794 = vsel %vm788, %v791, %v793
        %v795 = vsel %vm787, %v774, %v777
        %v796 = vsel %vm790, %v783, 920167782
        %v797 = vsel %vm789, %v780, %v796
        %v798 = vsel %vm788, %v795, %v797
        %v799 = vsel %vm787, %v777, %v780
        %v800 = vsel %vm790, %v786, 1326507024
        %v801 = vsel %vm789, %v783, %v800
        %v802 = vsel %vm788, %v799, %v801
        %v803 = vshll.u32 %v763, 8
        %v804 = vand.u32 %v803, 65535
        %v805 = vshrl.u32 %v803, 16
        %v806 = vand.u32 %v802, 65535
        %v807 = vshrl.u32 %v802, 16
        %v808 = vmul.u32 %v804, %v806
        %v809 = vmul.u32 %v804, %v807
        %v810 = vmul.u32 %v805, %v806
        %v811 = vmul.u32 %v805, %v807
        %v812 = vshll.u32 %v809, 16
        %v813 = vshrl.u32 %v809, 16
        %v814 = vshll.u32 %v810, 16
        %v815 = vshrl.u32 %v810, 16
        %vm816 = vc.u32 %v808, %v812
        %v817 = vsel %vm816, 1, 0
        %v818 = vadd.s32 %v808, %v812
        %v819 = vadd.s32 %v811, %v817
        %vm820 = vc.u32 %v818, %v814
        %v821 = vsel %vm820, 1, 0
        %v822 = vadd.s32 %v818, %v814
        %v823 = vadd.s32 %v819, %v821
        %v824 = vadd.s32 %v823, %v813
        %v825 = vadd.s32 %v824, %v815
        %v826 = vand.u32 %v803, 65535
        %v827 = vshrl.u32 %v803, 16
        %v828 = vand.u32 %v798, 65535
        %v829 = vshrl.u32 %v798, 16
        %v830 = vmul.u32 %v826, %v828
        %v831 = vmul.u32 %v826, %v829
        %v832 = vmul.u32 %v827, %v828
        %v833 = vmul.u32 %v827, %v829
        %v834 = vshll.u32 %v831, 16
        %v835 = vshrl.u32 %v831, 16
        %v836 = vshll.u32 %v832, 16
        %v837 = vshrl.u32 %v832, 16
        %vm838 = vc.u32 %v830, %v834
        %v839 = vsel %vm838, 1, 0
        %v840 = vadd.s32 %v830, %v834
        %v841 = vadd.s32 %v833, %v839
        %vm842 = vc.u32 %v840, %v836
        %v843 = vsel %vm842, 1, 0
        %v844 = vadd.s32 %v840, %v836
        %v845 = vadd.s32 %v841, %v843
        %v846 = vadd.s32 %v845, %v835
        %v847 = vadd.s32 %v846, %v837
        %v848 = vmul.u32 %v803, %v794
        %v849 = vadd.s32 %v825, %v844
        %vm850 = vc.u32 %v825, %v844
        %v851 = vadd.s32 %v847, 1
        %v852 = vsel %vm850, %v851, %v847
        %v853 = vadd.s32 %v848, %v852
        %v854 = vadd.s32 %v853, 536870912
        %v855 = vshrl.u32 %v854, 30
        %v856 = vshll.u32 %v855, 30
        %v857 = vsub.s32 %v853, %v856
        %vm858 = vcmp.lt.s32.totalorder %v857, 0
        %v859 = vsub.s32 0, %v857
        %v860 = vsel %vm858, %v859, %v857
        %v861 = vclz %v860
        %v862 = vsub.s32 %v861, 2
        %vm863 = vcmp.gt.s32.totalorder 0, %v862
        %v864 = vsel %vm863, 0, %v862
        %v865 = vsub.s32 32, %v864
        %v866 = vshll.u32 %v857, %v864
        %v867 = vshrl.u32 %v849, %v865
        %v868 = vor.u32 %v866, %v867
        %v869 = vsub.s32 4294967266, %v864
        %v870 = vadd.s32 %v869, 127
        %v871 = vshll.u32 %v870, 23
        %v872 = vor.u32 4788187, %v871
        %v873 = vand.u32 2147483647, %v872
        %v875 = vcvt.s32.f32 %v868
        %v876 = vmul.f32 %v875, %v873
        %v877 = vxor.u32 %v876, 2147483648
        %v878 = vsel %vm757, %v877, %v876
        %v879 = vsub.s32 4, %v855
        %v880 = vsel %vm757, %v879, %v855
        %v881 = vsel %vm756, %v292, %v878
        %v882 = vsel %vm756, 0, %v880
        %v883 = vmul.f32 %v881, %v881
        %v884 = vmul.f32 %v883, -0.001358992
        %v885 = vadd.f32 %v884, 0.041655596
        %v886 = vmul.f32 %v883, %v885
        %v887 = vadd.f32 %v886, -0.4999988
        %v888 = vmul.f32 %v883, %v887
        %v889 = vadd.f32 1.0, %v888
        %v890 = vmul.f32 %v881, %v881
        %v891 = vmul.f32 %v890, -0.00019511016
        %v892 = vadd.f32 %v891, 0.008332121
        %v893 = vmul.f32 %v890, %v892
        %v894 = vadd.f32 %v893, -0.16666654
        %v895 = vmul.f32 %v890, %v894
        %v896 = vadd.f32 %v895, 1.0
        %v897 = vmul.f32 %v896, %v881
        %vm898 = vweird.f32 %v292
        %v899 = vand.u32 %v882, 3
        %vm900 = vcmp.lt.s32.totalorder %v899, 2
        %vm901 = vcmp.eq.s32.totalorder %v899, 0
        %v902 = vxor.u32 %v897, 2147483648
        %v903 = vsel %vm901, %v889, %v902
        %vm904 = vcmp.eq.s32.totalorder %v899, 2
        %v905 = vxor.u32 %v889, 2147483648
        %v906 = vsel %vm904, %v905, %v897
        %v907 = vsel %vm900, %v903, %v906
        %v908 = vsel %vm898, nan, %v907
        %v909 = vand.u32 2147483647, %v289
        %vm910 = vcmp.le.f32.partialorder %v909, 0.7853982
        %vm911 = vcmp.lt.s32.totalorder %v289, 0
        %v912 = vand.u32 %v289, 2139095040
        %v913 = vshrl.u32 %v912, 23
        %v914 = vsub.s32 %v913, 127
        %v915 = vand.u32 2147483647, %v289
        %v916 = vand.u32 %v915, 8388607
        %v917 = vor.u32 %v916, 8388608
        %v918 = vsub.s32 0, %v917
        %v919 = vadd.s32 %v914, 1
        %vm920 = vcmp.gt.s32.totalorder %v919, 0
        %v921 = vsel %vm920, %v919, 0
        %v922 = vshrl.u32 %v921, 5
        %v923 = vand.u32 %v921, 31
        %v924 = vsub.s32 32, %v923
        %v925 = vshrl.u32 683565275, %v924
        %v926 = vshll.u32 683565275, %v923
        %v927 = vshrl.u32 2475754826, %v924
        %v928 = vor.u32 %v926, %v927
        %v929 = vshll.u32 2475754826, %v923
        %v930 = vshrl.u32 2131351028, %v924
        %v931 = vor.u32 %v929, %v930
        %v932 = vshll.u32 2131351028, %v923
        %v933 = vshrl.u32 2102212464, %v924
        %v934 = vor.u32 %v932, %v933
        %v935 = vshll.u32 2102212464, %v923
        %v936 = vshrl.u32 920167782, %v924
        %v937 = vor.u32 %v935, %v936
        %v938 = vshll.u32 920167782, %v923
        %v939 = vshrl.u32 1326507024, %v924
        %v940 = vor.u32 %v938, %v939
        %vm941 = vcmp.lt.s32.totalorder %v922, 1
        %vm942 = vcmp.lt.s32.totalorder %v922, 2
        %vm943 = vcmp.lt.s32.totalorder %v922, 3
        %vm944 = vcmp.lt.s32.totalorder %v922, 4
        %v945 = vsel %vm941, %v925, %v928
        %v946 = vsel %vm944, %v934, 2102212464
        %v947 = vsel %vm943, %v931, %v946
        %v948 = vsel %vm942, %v945, %v947
        %v949 = vsel %vm941, %v928, %v931
        %v950 = vsel %vm944, %v937, 920167782
        %v951 = vsel %vm943, %v934, %v950
        %v952 = vsel %vm942, %v949, %v951
        %v953 = vsel %vm941, %v931, %v934
        %v954 = vsel %vm944, %v940, 1326507024
        %v955 = vsel %vm943, %v937, %v954
        %v956 = vsel %vm942, %v953, %v955
        %v957 = vshll.u32 %v917, 8
        %v958 = vand.u32 %v957, 65535
        %v959 = vshrl.u32 %v957, 16
        %v960 = vand.u32 %v956, 65535
        %v961 = vshrl.u32 %v956, 16
        %v962 = vmul.u32 %v958, %v960
        %v963 = vmul.u32 %v958, %v961
        %v964 = vmul.u32 %v959, %v960
        %v965 = vmul.u32 %v959, %v961
        %v966 = vshll.u32 %v963, 16
        %v967 = vshrl.u32 %v963, 16
        %v968 = vshll.u32 %v964, 16
        %v969 = vshrl.u32 %v964, 16
        %vm970 = vc.u32 %v962, %v966
        %v971 = vsel %vm970, 1, 0
        %v972 = vadd.s32 %v962, %v966
        %v973 = vadd.s32 %v965, %v971
        %vm974 = vc.u32 %v972, %v968
        %v975 = vsel %vm974, 1, 0
        %v976 = vadd.s32 %v972, %v968
        %v977 = vadd.s32 %v973, %v975
        %v978 = vadd.s32 %v977, %v967
        %v979 = vadd.s32 %v978, %v969
        %v980 = vand.u32 %v957, 65535
        %v981 = vshrl.u32 %v957, 16
        %v982 = vand.u32 %v952, 65535
        %v983 = vshrl.u32 %v952, 16
        %v984 = vmul.u32 %v980, %v982
        %v985 = vmul.u32 %v980, %v983
        %v986 = vmul.u32 %v981, %v982
        %v987 = vmul.u32 %v981, %v983
        %v988 = vshll.u32 %v985, 16
        %v989 = vshrl.u32 %v985, 16
        %v990 = vshll.u32 %v986, 16
        %v991 = vshrl.u32 %v986, 16
        %vm992 = vc.u32 %v984, %v988
        %v993 = vsel %vm992, 1, 0
        %v994 = vadd.s32 %v984, %v988
        %v995 = vadd.s32 %v987, %v993
        %vm996 = vc.u32 %v994, %v990
        %v997 = vsel %vm996, 1, 0
        %v998 = vadd.s32 %v994, %v990
        %v999 = vadd.s32 %v995, %v997
        %v1000 = vadd.s32 %v999, %v989
        %v1001 = vadd.s32 %v1000, %v991
        %v1002 = vmul.u32 %v957, %v948
        %v1003 = vadd.s32 %v979, %v998
        %vm1004 = vc.u32 %v979, %v998
        %v1005 = vadd.s32 %v1001, 1
        %v1006 = vsel %vm1004, %v1005, %v1001
        %v1007 = vadd.s32 %v1002, %v1006
        %v1008 = vadd.s32 %v1007, 536870912
        %v1009 = vshrl.u32 %v1008, 30
        %v1010 = vshll.u32 %v1009, 30
        %v1011 = vsub.s32 %v1007, %v1010
        %vm1012 = vcmp.lt.s32.totalorder %v1011, 0
        %v1013 = vsub.s32 0, %v1011
        %v1014 = vsel %vm1012, %v1013, %v1011
        %v1015 = vclz %v1014
        %v1016 = vsub.s32 %v1015, 2
        %vm1017 = vcmp.gt.s32.totalorder 0, %v1016
        %v1018 = vsel %vm1017, 0, %v1016
        %v1019 = vsub.s32 32, %v1018
        %v1020 = vshll.u32 %v1011, %v1018
        %v1021 = vshrl.u32 %v1003, %v1019
        %v1022 = vor.u32 %v1020, %v1021
        %v1023 = vsub.s32 4294967266, %v1018
        %v1024 = vadd.s32 %v1023, 127
        %v1025 = vshll.u32 %v1024, 23
        %v1026 = vor.u32 4788187, %v1025
        %v1027 = vand.u32 2147483647, %v1026
        %v1029 = vcvt.s32.f32 %v1022
        %v1030 = vmul.f32 %v1029, %v1027
        %v1031 = vxor.u32 %v1030, 2147483648
        %v1032 = vsel %vm911, %v1031, %v1030
        %v1033 = vsub.s32 4, %v1009
        %v1034 = vsel %vm911, %v1033, %v1009
        %v1035 = vsel %vm910, %v289, %v1032
        %v1036 = vsel %vm910, 0, %v1034
        %v1037 = vmul.f32 %v1035, %v1035
        %v1038 = vmul.f32 %v1037, -0.001358992
        %v1039 = vadd.f32 %v1038, 0.041655596
        %v1040 = vmul.f32 %v1037, %v1039
        %v1041 = vadd.f32 %v1040, -0.4999988
        %v1042 = vmul.f32 %v1037, %v1041
        %v1043 = vadd.f32 1.0, %v1042
        %v1044 = vmul.f32 %v1035, %v1035
        %v1045 = vmul.f32 %v1044, -0.00019511016
        %v1046 = vadd.f32 %v1045, 0.008332121
        %v1047 = vmul.f32 %v1044, %v1046
        %v1048 = vadd.f32 %v1047, -0.16666654
        %v1049 = vmul.f32 %v1044, %v1048
        %v1050 = vadd.f32 %v1049, 1.0
        %v1051 = vmul.f32 %v1050, %v1035
        %vm1052 = vweird.f32 %v289
        %v1053 = vadd.s32 %v1036, 3
        %v1054 = vand.u32 %v1053, 3
        %vm1055 = vcmp.lt.s32.totalorder %v1054, 2
        %vm1056 = vcmp.eq.s32.totalorder %v1054, 0
        %v1057 = vxor.u32 %v1051, 2147483648
        %v1058 = vsel %vm1056, %v1043, %v1057
        %vm1059 = vcmp.eq.s32.totalorder %v1054, 2
        %v1060 = vxor.u32 %v1043, 2147483648
        %v1061 = vsel %vm1059, %v1060, %v1051
        %v1062 = vsel %vm1055, %v1058, %v1061
        %v1063 = vsel %vm1052, nan, %v1062
        %v1064 = vand.u32 2147483647, %v290
        %vm1065 = vcmp.le.f32.partialorder %v1064, 0.7853982
        %vm1066 = vcmp.lt.s32.totalorder %v290, 0
        %v1067 = vand.u32 %v290, 2139095040
        %v1068 = vshrl.u32 %v1067, 23
        %v1069 = vsub.s32 %v1068, 127
        %v1070 = vand.u32 2147483647, %v290
        %v1071 = vand.u32 %v1070, 8388607
        %v1072 = vor.u32 %v1071, 8388608
        %v1073 = vsub.s32 0, %v1072
        %v1074 = vadd.s32 %v1069, 1
        %vm1075 = vcmp.gt.s32.totalorder %v1074, 0
        %v1076 = vsel %vm1075, %v1074, 0
        %v1077 = vshrl.u32 %v1076, 5
        %v1078 = vand.u32 %v1076, 31
        %v1079 = vsub.s32 32, %v1078
        %v1080 = vshrl.u32 683565275, %v1079
        %v1081 = vshll.u32 683565275, %v1078
        %v1082 = vshrl.u32 2475754826, %v1079
        %v1083 = vor.u32 %v1081, %v1082
        %v1084 = vshll.u32 2475754826, %v1078
        %v1085 = vshrl.u32 2131351028, %v1079
        %v1086 = vor.u32 %v1084, %v1085
        %v1087 = vshll.u32 2131351028, %v1078
        %v1088 = vshrl.u32 2102212464, %v1079
        %v1089 = vor.u32 %v1087, %v1088
        %v1090 = vshll.u32 2102212464, %v1078
        %v1091 = vshrl.u32 920167782, %v1079
        %v1092 = vor.u32 %v1090, %v1091
        %v1093 = vshll.u32 920167782, %v1078
        %v1094 = vshrl.u32 1326507024, %v1079
        %v1095 = vor.u32 %v1093, %v1094
        %vm1096 = vcmp.lt.s32.totalorder %v1077, 1
        %vm1097 = vcmp.lt.s32.totalorder %v1077, 2
        %vm1098 = vcmp.lt.s32.totalorder %v1077, 3
        %vm1099 = vcmp.lt.s32.totalorder %v1077, 4
        %v1100 = vsel %vm1096, %v1080, %v1083
        %v1101 = vsel %vm1099, %v1089, 2102212464
        %v1102 = vsel %vm1098, %v1086, %v1101
        %v1103 = vsel %vm1097, %v1100, %v1102
        %v1104 = vsel %vm1096, %v1083, %v1086
        %v1105 = vsel %vm1099, %v1092, 920167782
        %v1106 = vsel %vm1098, %v1089, %v1105
        %v1107 = vsel %vm1097, %v1104, %v1106
        %v1108 = vsel %vm1096, %v1086, %v1089
        %v1109 = vsel %vm1099, %v1095, 1326507024
        %v1110 = vsel %vm1098, %v1092, %v1109
        %v1111 = vsel %vm1097, %v1108, %v1110
        %v1112 = vshll.u32 %v1072, 8
        %v1113 = vand.u32 %v1112, 65535
        %v1114 = vshrl.u32 %v1112, 16
        %v1115 = vand.u32 %v1111, 65535
        %v1116 = vshrl.u32 %v1111, 16
        %v1117 = vmul.u32 %v1113, %v1115
        %v1118 = vmul.u32 %v1113, %v1116
        %v1119 = vmul.u32 %v1114, %v1115
        %v1120 = vmul.u32 %v1114, %v1116
        %v1121 = vshll.u32 %v1118, 16
        %v1122 = vshrl.u32 %v1118, 16
        %v1123 = vshll.u32 %v1119, 16
        %v1124 = vshrl.u32 %v1119, 16
        %vm1125 = vc.u32 %v1117, %v1121
        %v1126 = vsel %vm1125, 1, 0
        %v1127 = vadd.s32 %v1117, %v1121
        %v1128 = vadd.s32 %v1120, %v1126
        %vm1129 = vc.u32 %v1127, %v1123
        %v1130 = vsel %vm1129, 1, 0
        %v1131 = vadd.s32 %v1127, %v1123
        %v1132 = vadd.s32 %v1128, %v1130
        %v1133 = vadd.s32 %v1132, %v1122
        %v1134 = vadd.s32 %v1133, %v1124
        %v1135 = vand.u32 %v1112, 65535
        %v1136 = vshrl.u32 %v1112, 16
        %v1137 = vand.u32 %v1107, 65535
        %v1138 = vshrl.u32 %v1107, 16
        %v1139 = vmul.u32 %v1135, %v1137
        %v1140 = vmul.u32 %v1135, %v1138
        %v1141 = vmul.u32 %v1136, %v1137
        %v1142 = vmul.u32 %v1136, %v1138
        %v1143 = vshll.u32 %v1140, 16
        %v1144 = vshrl.u32 %v1140, 16
        %v1145 = vshll.u32 %v1141, 16
        %v1146 = vshrl.u32 %v1141, 16
        %vm1147 = vc.u32 %v1139, %v1143
        %v1148 = vsel %vm1147, 1, 0
        %v1149 = vadd.s32 %v1139, %v1143
        %v1150 = vadd.s32 %v1142, %v1148
        %vm1151 = vc.u32 %v1149, %v1145
        %v1152 = vsel %vm1151, 1, 0
        %v1153 = vadd.s32 %v1149, %v1145
        %v1154 = vadd.s32 %v1150, %v1152
        %v1155 = vadd.s32 %v1154, %v1144
        %v1156 = vadd.s32 %v1155, %v1146
        %v1157 = vmul.u32 %v1112, %v1103
        %v1158 = vadd.s32 %v1134, %v1153
        %vm1159 = vc.u32 %v1134, %v1153
        %v1160 = vadd.s32 %v1156, 1
        %v1161 = vsel %vm1159, %v1160, %v1156
        %v1162 = vadd.s32 %v1157, %v1161
        %v1163 = vadd.s32 %v1162, 536870912
        %v1164 = vshrl.u32 %v1163, 30
        %v1165 = vshll.u32 %v1164, 30
        %v1166 = vsub.s32 %v1162, %v1165
        %vm1167 = vcmp.lt.s32.totalorder %v1166, 0
        %v1168 = vsub.s32 0, %v1166
        %v1169 = vsel %vm1167, %v1168, %v1166
        %v1170 = vclz %v1169
        %v1171 = vsub.s32 %v1170, 2
        %vm1172 = vcmp.gt.s32.totalorder 0, %v1171
        %v1173 = vsel %vm1172, 0, %v1171
        %v1174 = vsub.s32 32, %v1173
        %v1175 = vshll.u32 %v1166, %v1173
        %v1176 = vshrl.u32 %v1158, %v1174
        %v1177 = vor.u32 %v1175, %v1176
        %v1178 = vsub.s32 4294967266, %v1173
        %v1179 = vadd.s32 %v1178, 127
        %v1180 = vshll.u32 %v1179, 23
        %v1181 = vor.u32 4788187, %v1180
        %v1182 = vand.u32 2147483647, %v1181
        %v1184 = vcvt.s32.f32 %v1177
        %v1185 = vmul.f32 %v1184, %v1182
        %v1186 = vxor.u32 %v1185, 2147483648
        %v1187 = vsel %vm1066, %v1186, %v1185
        %v1188 = vsub.s32 4, %v1164
        %v1189 = vsel %vm1066, %v1188, %v1164
        %v1190 = vsel %vm1065, %v290, %v1187
        %v1191 = vsel %vm1065, 0, %v1189
        %v1192 = vmul.f32 %v1190, %v1190
        %v1193 = vmul.f32 %v1192, -0.001358992
        %v1194 = vadd.f32 %v1193, 0.041655596
        %v1195 = vmul.f32 %v1192, %v1194
        %v1196 = vadd.f32 %v1195, -0.4999988
        %v1197 = vmul.f32 %v1192, %v1196
        %v1198 = vadd.f32 1.0, %v1197
        %v1199 = vmul.f32 %v1190, %v1190
        %v1200 = vmul.f32 %v1199, -0.00019511016
        %v1201 = vadd.f32 %v1200, 0.008332121
        %v1202 = vmul.f32 %v1199, %v1201
        %v1203 = vadd.f32 %v1202, -0.16666654
        %v1204 = vmul.f32 %v1199, %v1203
        %v1205 = vadd.f32 %v1204, 1.0
        %v1206 = vmul.f32 %v1205, %v1190
        %vm1207 = vweird.f32 %v290
        %v1208 = vadd.s32 %v1191, 3
        %v1209 = vand.u32 %v1208, 3
        %vm1210 = vcmp.lt.s32.totalorder %v1209, 2
        %vm1211 = vcmp.eq.s32.totalorder %v1209, 0
        %v1212 = vxor.u32 %v1206, 2147483648
        %v1213 = vsel %vm1211, %v1198, %v1212
        %vm1214 = vcmp.eq.s32.totalorder %v1209, 2
        %v1215 = vxor.u32 %v1198, 2147483648
        %v1216 = vsel %vm1214, %v1215, %v1206
        %v1217 = vsel %vm1210, %v1213, %v1216
        %v1218 = vsel %vm1207, nan, %v1217
        %v1219 = vand.u32 2147483647, %v291
        %vm1220 = vcmp.le.f32.partialorder %v1219, 0.7853982
        %vm1221 = vcmp.lt.s32.totalorder %v291, 0
        %v1222 = vand.u32 %v291, 2139095040
        %v1223 = vshrl.u32 %v1222, 23
        %v1224 = vsub.s32 %v1223, 127
        %v1225 = vand.u32 2147483647, %v291
        %v1226 = vand.u32 %v1225, 8388607
        %v1227 = vor.u32 %v1226, 8388608
        %v1228 = vsub.s32 0, %v1227
        %v1229 = vadd.s32 %v1224, 1
        %vm1230 = vcmp.gt.s32.totalorder %v1229, 0
        %v1231 = vsel %vm1230, %v1229, 0
        %v1232 = vshrl.u32 %v1231, 5
        %v1233 = vand.u32 %v1231, 31
        %v1234 = vsub.s32 32, %v1233
        %v1235 = vshrl.u32 683565275, %v1234
        %v1236 = vshll.u32 683565275, %v1233
        %v1237 = vshrl.u32 2475754826, %v1234
        %v1238 = vor.u32 %v1236, %v1237
        %v1239 = vshll.u32 2475754826, %v1233
        %v1240 = vshrl.u32 2131351028, %v1234
        %v1241 = vor.u32 %v1239, %v1240
        %v1242 = vshll.u32 2131351028, %v1233
        %v1243 = vshrl.u32 2102212464, %v1234
        %v1244 = vor.u32 %v1242, %v1243
        %v1245 = vshll.u32 2102212464, %v1233
        %v1246 = vshrl.u32 920167782, %v1234
        %v1247 = vor.u32 %v1245, %v1246
        %v1248 = vshll.u32 920167782, %v1233
        %v1249 = vshrl.u32 1326507024, %v1234
        %v1250 = vor.u32 %v1248, %v1249
        %vm1251 = vcmp.lt.s32.totalorder %v1232, 1
        %vm1252 = vcmp.lt.s32.totalorder %v1232, 2
        %vm1253 = vcmp.lt.s32.totalorder %v1232, 3
        %vm1254 = vcmp.lt.s32.totalorder %v1232, 4
        %v1255 = vsel %vm1251, %v1235, %v1238
        %v1256 = vsel %vm1254, %v1244, 2102212464
        %v1257 = vsel %vm1253, %v1241, %v1256
        %v1258 = vsel %vm1252, %v1255, %v1257
        %v1259 = vsel %vm1251, %v1238, %v1241
        %v1260 = vsel %vm1254, %v1247, 920167782
        %v1261 = vsel %vm1253, %v1244, %v1260
        %v1262 = vsel %vm1252, %v1259, %v1261
        %v1263 = vsel %vm1251, %v1241, %v1244
        %v1264 = vsel %vm1254, %v1250, 1326507024
        %v1265 = vsel %vm1253, %v1247, %v1264
        %v1266 = vsel %vm1252, %v1263, %v1265
        %v1267 = vshll.u32 %v1227, 8
        %v1268 = vand.u32 %v1267, 65535
        %v1269 = vshrl.u32 %v1267, 16
        %v1270 = vand.u32 %v1266, 65535
        %v1271 = vshrl.u32 %v1266, 16
        %v1272 = vmul.u32 %v1268, %v1270
        %v1273 = vmul.u32 %v1268, %v1271
        %v1274 = vmul.u32 %v1269, %v1270
        %v1275 = vmul.u32 %v1269, %v1271
        %v1276 = vshll.u32 %v1273, 16
        %v1277 = vshrl.u32 %v1273, 16
        %v1278 = vshll.u32 %v1274, 16
        %v1279 = vshrl.u32 %v1274, 16
        %vm1280 = vc.u32 %v1272, %v1276
        %v1281 = vsel %vm1280, 1, 0
        %v1282 = vadd.s32 %v1272, %v1276
        %v1283 = vadd.s32 %v1275, %v1281
        %vm1284 = vc.u32 %v1282, %v1278
        %v1285 = vsel %vm1284, 1, 0
        %v1286 = vadd.s32 %v1282, %v1278
        %v1287 = vadd.s32 %v1283, %v1285
        %v1288 = vadd.s32 %v1287, %v1277
        %v1289 = vadd.s32 %v1288, %v1279
        %v1290 = vand.u32 %v1267, 65535
        %v1291 = vshrl.u32 %v1267, 16
        %v1292 = vand.u32 %v1262, 65535
        %v1293 = vshrl.u32 %v1262, 16
        %v1294 = vmul.u32 %v1290, %v1292
        %v1295 = vmul.u32 %v1290, %v1293
        %v1296 = vmul.u32 %v1291, %v1292
        %v1297 = vmul.u32 %v1291, %v1293
        %v1298 = vshll.u32 %v1295, 16
        %v1299 = vshrl.u32 %v1295, 16
        %v1300 = vshll.u32 %v1296, 16
        %v1301 = vshrl.u32 %v1296, 16
        %vm1302 = vc.u32 %v1294, %v1298
        %v1303 = vsel %vm1302, 1, 0
        %v1304 = vadd.s32 %v1294, %v1298
        %v1305 = vadd.s32 %v1297, %v1303
        %vm1306 = vc.u32 %v1304, %v1300
        %v1307 = vsel %vm1306, 1, 0
        %v1308 = vadd.s32 %v1304, %v1300
        %v1309 = vadd.s32 %v1305, %v1307
        %v1310 = vadd.s32 %v1309, %v1299
        %v1311 = vadd.s32 %v1310, %v1301
        %v1312 = vmul.u32 %v1267, %v1258
        %v1313 = vadd.s32 %v1289, %v1308
        %vm1314 = vc.u32 %v1289, %v1308
        %v1315 = vadd.s32 %v1311, 1
        %v1316 = vsel %vm1314, %v1315, %v1311
        %v1317 = vadd.s32 %v1312, %v1316
        %v1318 = vadd.s32 %v1317, 536870912
        %v1319 = vshrl.u32 %v1318, 30
        %v1320 = vshll.u32 %v1319, 30
        %v1321 = vsub.s32 %v1317, %v1320
        %vm1322 = vcmp.lt.s32.totalorder %v1321, 0
        %v1323 = vsub.s32 0, %v1321
        %v1324 = vsel %vm1322, %v1323, %v1321
        %v1325 = vclz %v1324
        %v1326 = vsub.s32 %v1325, 2
        %vm1327 = vcmp.gt.s32.totalorder 0, %v1326
        %v1328 = vsel %vm1327, 0, %v1326
        %v1329 = vsub.s32 32, %v1328
        %v1330 = vshll.u32 %v1321, %v1328
        %v1331 = vshrl.u32 %v1313, %v1329
        %v1332 = vor.u32 %v1330, %v1331
        %v1333 = vsub.s32 4294967266, %v1328
        %v1334 = vadd.s32 %v1333, 127
        %v1335 = vshll.u32 %v1334, 23
        %v1336 = vor.u32 4788187, %v1335
        %v1337 = vand.u32 2147483647, %v1336
        %v1339 = vcvt.s32.f32 %v1332
        %v1340 = vmul.f32 %v1339, %v1337
        %v1341 = vxor.u32 %v1340, 2147483648
        %v1342 = vsel %vm1221, %v1341, %v1340
        %v1343 = vsub.s32 4, %v1319
        %v1344 = vsel %vm1221, %v1343, %v1319
        %v1345 = vsel %vm1220, %v291, %v1342
        %v1346 = vsel %vm1220, 0, %v1344
        %v1347 = vmul.f32 %v1345, %v1345
        %v1348 = vmul.f32 %v1347, -0.001358992
        %v1349 = vadd.f32 %v1348, 0.041655596
        %v1350 = vmul.f32 %v1347, %v1349
        %v1351 = vadd.f32 %v1350, -0.4999988
        %v1352 = vmul.f32 %v1347, %v1351
        %v1353 = vadd.f32 1.0, %v1352
        %v1354 = vmul.f32 %v1345, %v1345
        %v1355 = vmul.f32 %v1354, -0.00019511016
        %v1356 = vadd.f32 %v1355, 0.008332121
        %v1357 = vmul.f32 %v1354, %v1356
        %v1358 = vadd.f32 %v1357, -0.16666654
        %v1359 = vmul.f32 %v1354, %v1358
        %v1360 = vadd.f32 %v1359, 1.0
        %v1361 = vmul.f32 %v1360, %v1345
        %vm1362 = vweird.f32 %v291
        %v1363 = vadd.s32 %v1346, 3
        %v1364 = vand.u32 %v1363, 3
        %vm1365 = vcmp.lt.s32.totalorder %v1364, 2
        %vm1366 = vcmp.eq.s32.totalorder %v1364, 0
        %v1367 = vxor.u32 %v1361, 2147483648
        %v1368 = vsel %vm1366, %v1353, %v1367
        %vm1369 = vcmp.eq.s32.totalorder %v1364, 2
        %v1370 = vxor.u32 %v1353, 2147483648
        %v1371 = vsel %vm1369, %v1370, %v1361
        %v1372 = vsel %vm1365, %v1368, %v1371
        %v1373 = vsel %vm1362, nan, %v1372
        %v1374 = vand.u32 2147483647, %v292
        %vm1375 = vcmp.le.f32.partialorder %v1374, 0.7853982
        %vm1376 = vcmp.lt.s32.totalorder %v292, 0
        %v1377 = vand.u32 %v292, 2139095040
        %v1378 = vshrl.u32 %v1377, 23
        %v1379 = vsub.s32 %v1378, 127
        %v1380 = vand.u32 2147483647, %v292
        %v1381 = vand.u32 %v1380, 8388607
        %v1382 = vor.u32 %v1381, 8388608
        %v1383 = vsub.s32 0, %v1382
        %v1384 = vadd.s32 %v1379, 1
        %vm1385 = vcmp.gt.s32.totalorder %v1384, 0
        %v1386 = vsel %vm1385, %v1384, 0
        %v1387 = vshrl.u32 %v1386, 5
        %v1388 = vand.u32 %v1386, 31
        %v1389 = vsub.s32 32, %v1388
        %v1390 = vshrl.u32 683565275, %v1389
        %v1391 = vshll.u32 683565275, %v1388
        %v1392 = vshrl.u32 2475754826, %v1389
        %v1393 = vor.u32 %v1391, %v1392
        %v1394 = vshll.u32 2475754826, %v1388
        %v1395 = vshrl.u32 2131351028, %v1389
        %v1396 = vor.u32 %v1394, %v1395
        %v1397 = vshll.u32 2131351028, %v1388
        %v1398 = vshrl.u32 2102212464, %v1389
        %v1399 = vor.u32 %v1397, %v1398
        %v1400 = vshll.u32 2102212464, %v1388
        %v1401 = vshrl.u32 920167782, %v1389
        %v1402 = vor.u32 %v1400, %v1401
        %v1403 = vshll.u32 920167782, %v1388
        %v1404 = vshrl.u32 1326507024, %v1389
        %v1405 = vor.u32 %v1403, %v1404
        %vm1406 = vcmp.lt.s32.totalorder %v1387, 1
        %vm1407 = vcmp.lt.s32.totalorder %v1387, 2
        %vm1408 = vcmp.lt.s32.totalorder %v1387, 3
        %vm1409 = vcmp.lt.s32.totalorder %v1387, 4
        %v1410 = vsel %vm1406, %v1390, %v1393
        %v1411 = vsel %vm1409, %v1399, 2102212464
        %v1412 = vsel %vm1408, %v1396, %v1411
        %v1413 = vsel %vm1407, %v1410, %v1412
        %v1414 = vsel %vm1406, %v1393, %v1396
        %v1415 = vsel %vm1409, %v1402, 920167782
        %v1416 = vsel %vm1408, %v1399, %v1415
        %v1417 = vsel %vm1407, %v1414, %v1416
        %v1418 = vsel %vm1406, %v1396, %v1399
        %v1419 = vsel %vm1409, %v1405, 1326507024
        %v1420 = vsel %vm1408, %v1402, %v1419
        %v1421 = vsel %vm1407, %v1418, %v1420
        %v1422 = vshll.u32 %v1382, 8
        %v1423 = vand.u32 %v1422, 65535
        %v1424 = vshrl.u32 %v1422, 16
        %v1425 = vand.u32 %v1421, 65535
        %v1426 = vshrl.u32 %v1421, 16
        %v1427 = vmul.u32 %v1423, %v1425
        %v1428 = vmul.u32 %v1423, %v1426
        %v1429 = vmul.u32 %v1424, %v1425
        %v1430 = vmul.u32 %v1424, %v1426
        %v1431 = vshll.u32 %v1428, 16
        %v1432 = vshrl.u32 %v1428, 16
        %v1433 = vshll.u32 %v1429, 16
        %v1434 = vshrl.u32 %v1429, 16
        %vm1435 = vc.u32 %v1427, %v1431
        %v1436 = vsel %vm1435, 1, 0
        %v1437 = vadd.s32 %v1427, %v1431
        %v1438 = vadd.s32 %v1430, %v1436
        %vm1439 = vc.u32 %v1437, %v1433
        %v1440 = vsel %vm1439, 1, 0
        %v1441 = vadd.s32 %v1437, %v1433
        %v1442 = vadd.s32 %v1438, %v1440
        %v1443 = vadd.s32 %v1442, %v1432
        %v1444 = vadd.s32 %v1443, %v1434
        %v1445 = vand.u32 %v1422, 65535
        %v1446 = vshrl.u32 %v1422, 16
        %v1447 = vand.u32 %v1417, 65535
        %v1448 = vshrl.u32 %v1417, 16
        %v1449 = vmul.u32 %v1445, %v1447
        %v1450 = vmul.u32 %v1445, %v1448
        %v1451 = vmul.u32 %v1446, %v1447
        %v1452 = vmul.u32 %v1446, %v1448
        %v1453 = vshll.u32 %v1450, 16
        %v1454 = vshrl.u32 %v1450, 16
        %v1455 = vshll.u32 %v1451, 16
        %v1456 = vshrl.u32 %v1451, 16
        %vm1457 = vc.u32 %v1449, %v1453
        %v1458 = vsel %vm1457, 1, 0
        %v1459 = vadd.s32 %v1449, %v1453
        %v1460 = vadd.s32 %v1452, %v1458
        %vm1461 = vc.u32 %v1459, %v1455
        %v1462 = vsel %vm1461, 1, 0
        %v1463 = vadd.s32 %v1459, %v1455
        %v1464 = vadd.s32 %v1460, %v1462
        %v1465 = vadd.s32 %v1464, %v1454
        %v1466 = vadd.s32 %v1465, %v1456
        %v1467 = vmul.u32 %v1422, %v1413
        %v1468 = vadd.s32 %v1444, %v1463
        %vm1469 = vc.u32 %v1444, %v1463
        %v1470 = vadd.s32 %v1466, 1
        %v1471 = vsel %vm1469, %v1470, %v1466
        %v1472 = vadd.s32 %v1467, %v1471
        %v1473 = vadd.s32 %v1472, 536870912
        %v1474 = vshrl.u32 %v1473, 30
        %v1475 = vshll.u32 %v1474, 30
        %v1476 = vsub.s32 %v1472, %v1475
        %vm1477 = vcmp.lt.s32.totalorder %v1476, 0
        %v1478 = vsub.s32 0, %v1476
        %v1479 = vsel %vm1477, %v1478, %v1476
        %v1480 = vclz %v1479
        %v1481 = vsub.s32 %v1480, 2
        %vm1482 = vcmp.gt.s32.totalorder 0, %v1481
        %v1483 = vsel %vm1482, 0, %v1481
        %v1484 = vsub.s32 32, %v1483
        %v1485 = vshll.u32 %v1476, %v1483
        %v1486 = vshrl.u32 %v1468, %v1484
        %v1487 = vor.u32 %v1485, %v1486
        %v1488 = vsub.s32 4294967266, %v1483
        %v1489 = vadd.s32 %v1488, 127
        %v1490 = vshll.u32 %v1489, 23
        %v1491 = vor.u32 4788187, %v1490
        %v1492 = vand.u32 2147483647, %v1491
        %v1494 = vcvt.s32.f32 %v1487
        %v1495 = vmul.f32 %v1494, %v1492
        %v1496 = vxor.u32 %v1495, 2147483648
        %v1497 = vsel %vm1376, %v1496, %v1495
        %v1498 = vsub.s32 4, %v1474
        %v1499 = vsel %vm1376, %v1498, %v1474
        %v1500 = vsel %vm1375, %v292, %v1497
        %v1501 = vsel %vm1375, 0, %v1499
        %v1502 = vmul.f32 %v1500, %v1500
        %v1503 = vmul.f32 %v1502, -0.001358992
        %v1504 = vadd.f32 %v1503, 0.041655596
        %v1505 = vmul.f32 %v1502, %v1504
        %v1506 = vadd.f32 %v1505, -0.4999988
        %v1507 = vmul.f32 %v1502, %v1506
        %v1508 = vadd.f32 1.0, %v1507
        %v1509 = vmul.f32 %v1500, %v1500
        %v1510 = vmul.f32 %v1509, -0.00019511016
        %v1511 = vadd.f32 %v1510, 0.008332121
        %v1512 = vmul.f32 %v1509, %v1511
        %v1513 = vadd.f32 %v1512, -0.16666654
        %v1514 = vmul.f32 %v1509, %v1513
        %v1515 = vadd.f32 %v1514, 1.0
        %v1516 = vmul.f32 %v1515, %v1500
        %vm1517 = vweird.f32 %v292
        %v1518 = vadd.s32 %v1501, 3
        %v1519 = vand.u32 %v1518, 3
        %vm1520 = vcmp.lt.s32.totalorder %v1519, 2
        %vm1521 = vcmp.eq.s32.totalorder %v1519, 0
        %v1522 = vxor.u32 %v1516, 2147483648
        %v1523 = vsel %vm1521, %v1508, %v1522
        %vm1524 = vcmp.eq.s32.totalorder %v1519, 2
        %v1525 = vxor.u32 %v1508, 2147483648
        %v1526 = vsel %vm1524, %v1525, %v1516
        %v1527 = vsel %vm1520, %v1523, %v1526
        %v1528 = vsel %vm1517, nan, %v1527
        %vm1529 = vcmask 523264
        %v1531 = vsel %vm1529, %v139, 0
        %v1534 = vsel %vm1529, %v140, 0
        %v1537 = vsel %vm1529, %v141, 0
        %v1540 = vsel %vm1529, %v142, 0
        %1542 = vmatpush.msra.mxu0 0.0
        %1543 = vmatpush.msra.mxu0 0.0
        %1544 = vmatpush.msra.mxu0 0.0
        %1545 = vmatpush.msra.mxu0 0.0
        %1546 = vmatpush.msra.mxu0 0.0
        %1547 = vmatpush.msra.mxu0 0.0
        %1548 = vmatpush.msra.mxu0 0.0
        %1549 = vmatpush.msra.mxu0 0.0
        %1550 = vmatpush.msra.mxu0 %v1528
        %1551 = vmatpush.msra.mxu0 %v1373
        %1552 = vmatpush.msra.mxu0 %v1218
        %1553 = vmatpush.msra.mxu0 %v1063
        %1554 = vmatpush.msra.mxu0 %v908
        %1555 = vmatpush.msra.mxu0 %v754
        %1556 = vmatpush.msra.mxu0 %v600
        %1557 = vmatpush.msra.mxu0 %v446
        %1558 = vmatmul.f32.gmra.mxu0 %v1531
        %v1559 = vpop.f32.mrf.mxu0
        %v1560 = vadd.f32 0.0, %v1559
        %1561 = vmatmul.f32.gmra.mxu0 %v1534
        %v1562 = vpop.f32.mrf.mxu0
        %v1563 = vadd.f32 0.0, %v1562
        %1564 = vmatmul.f32.gmra.mxu0 %v1537
        %v1565 = vpop.f32.mrf.mxu0
        %v1566 = vadd.f32 0.0, %v1565
        %1567 = vmatmul.f32.gmra.mxu0 %v1540
        %v1568 = vpop.f32.mrf.mxu0
        %v1569 = vadd.f32 0.0, %v1568
        %1570 = vdwg.mxu0
        %v1571 = vperm.slane %v1560, 0
        %v1572 = vmul.f32 %v1560, %v1571
        %v1573 = vadd.f32 %v1572, 0.0
        %v1574 = vperm.slane %v1566, 0
        %v1575 = vmul.f32 %v1566, %v1574
        %v1576 = vadd.f32 %v1573, %v1575
        %v1577 = vmul.f32 %v1566, %v1571
        %v1578 = vadd.f32 %v1577, 0.0
        %v1579 = vmul.f32 %v1560, %v1574
        %v1580 = vsub.f32 %v1578, %v1579
        %v1581 = vperm.slane %v1560, 4
        %v1582 = vmul.f32 %v1560, %v1581
        %v1584 = vrot.slane %v1582, 4
        %v1586 = vadd.f32 %v1576, %v1584
        %v1587 = vperm.slane %v1566, 4
        %v1588 = vmul.f32 %v1566, %v1587
        %v1590 = vrot.slane %v1588, 4
        %v1592 = vadd.f32 %v1586, %v1590
        %v1593 = vmul.f32 %v1566, %v1581
        %v1595 = vrot.slane %v1593, 4
        %v1597 = vadd.f32 %v1580, %v1595
        %v1598 = vmul.f32 %v1560, %v1587
        %v1600 = vrot.slane %v1598, 4
        %v1602 = vsub.f32 %v1597, %v1600
        %v1603 = vperm.slane %v1563, 0
        %v1604 = vmul.f32 %v1563, %v1603
        %v1605 = vadd.f32 %v1592, %v1604
        %v1606 = vperm.slane %v1569, 0
        %v1607 = vmul.f32 %v1569, %v1606
        %v1608 = vadd.f32 %v1605, %v1607
        %v1609 = vmul.f32 %v1569, %v1603
        %v1610 = vadd.f32 %v1602, %v1609
        %v1611 = vmul.f32 %v1563, %v1606
        %v1612 = vsub.f32 %v1610, %v1611
        %v1613 = vperm.slane %v1563, 4
        %v1614 = vmul.f32 %v1563, %v1613
        %v1616 = vrot.slane %v1614, 4
        %v1618 = vadd.f32 %v1608, %v1616
        %v1619 = vperm.slane %v1569, 4
        %v1620 = vmul.f32 %v1569, %v1619
        %v1622 = vrot.slane %v1620, 4
        %v1624 = vadd.f32 %v1618, %v1622
        %v1625 = vmul.f32 %v1569, %v1613
        %v1627 = vrot.slane %v1625, 4
        %v1629 = vadd.f32 %v1612, %v1627
        %v1630 = vmul.f32 %v1563, %v1619
        %v1632 = vrot.slane %v1630, 4
        %v1634 = vsub.f32 %v1629, %v1632
        %vm1635 = vcmp.eq.s32.totalorder %v144, 0
        %v1636 = vsel %vm1635, 1, 0
        %v1637 = vcvt.s32.f32 %v1636
        %v1638 = vsub.f32 %v1624, %v1637
        %v1639 = vmul.f32 %v1638, %v1638
        %v1640 = vadd.f32 %v1639, 0.0
        %v1641 = vmul.f32 %v1634, %v1634
        %v1642 = vadd.f32 %v1640, %v1641
        %v1643 = vperm.slane %v1560, 1
        %v1644 = vmul.f32 %v1560, %v1643
        %v1645 = vadd.f32 %v1644, 0.0
        %v1646 = vperm.slane %v1566, 1
        %v1647 = vmul.f32 %v1566, %v1646
        %v1648 = vadd.f32 %v1645, %v1647
        %v1649 = vmul.f32 %v1566, %v1643
        %v1650 = vadd.f32 %v1649, 0.0
        %v1651 = vmul.f32 %v1560, %v1646
        %v1652 = vsub.f32 %v1650, %v1651
        %v1653 = vperm.slane %v1560, 5
        %v1654 = vmul.f32 %v1560, %v1653
        %v1656 = vrot.slane %v1654, 4
        %v1658 = vadd.f32 %v1648, %v1656
        %v1659 = vperm.slane %v1566, 5
        %v1660 = vmul.f32 %v1566, %v1659
        %v1662 = vrot.slane %v1660, 4
        %v1664 = vadd.f32 %v1658, %v1662
        %v1665 = vmul.f32 %v1566, %v1653
        %v1667 = vrot.slane %v1665, 4
        %v1669 = vadd.f32 %v1652, %v1667
        %v1670 = vmul.f32 %v1560, %v1659
        %v1672 = vrot.slane %v1670, 4
        %v1674 = vsub.f32 %v1669, %v1672
        %v1675 = vperm.slane %v1563, 1
        %v1676 = vmul.f32 %v1563, %v1675
        %v1677 = vadd.f32 %v1664, %v1676
        %v1678 = vperm.slane %v1569, 1
        %v1679 = vmul.f32 %v1569, %v1678
        %v1680 = vadd.f32 %v1677, %v1679
        %v1681 = vmul.f32 %v1569, %v1675
        %v1682 = vadd.f32 %v1674, %v1681
        %v1683 = vmul.f32 %v1563, %v1678
        %v1684 = vsub.f32 %v1682, %v1683
        %v1685 = vperm.slane %v1563, 5
        %v1686 = vmul.f32 %v1563, %v1685
        %v1688 = vrot.slane %v1686, 4
        %v1690 = vadd.f32 %v1680, %v1688
        %v1691 = vperm.slane %v1569, 5
        %v1692 = vmul.f32 %v1569, %v1691
        %v1694 = vrot.slane %v1692, 4
        %v1696 = vadd.f32 %v1690, %v1694
        %v1697 = vmul.f32 %v1569, %v1685
        %v1699 = vrot.slane %v1697, 4
        %v1701 = vadd.f32 %v1684, %v1699
        %v1702 = vmul.f32 %v1563, %v1691
        %v1704 = vrot.slane %v1702, 4
        %v1706 = vsub.f32 %v1701, %v1704
        %vm1707 = vcmp.eq.s32.totalorder %v144, 1
        %v1708 = vsel %vm1707, 1, 0
        %v1709 = vcvt.s32.f32 %v1708
        %v1710 = vsub.f32 %v1696, %v1709
        %v1711 = vmul.f32 %v1710, %v1710
        %v1712 = vadd.f32 %v1642, %v1711
        %v1713 = vmul.f32 %v1706, %v1706
        %v1714 = vadd.f32 %v1712, %v1713
        %v1715 = vperm.slane %v1560, 2
        %v1716 = vmul.f32 %v1560, %v1715
        %v1717 = vadd.f32 %v1716, 0.0
        %v1718 = vperm.slane %v1566, 2
        %v1719 = vmul.f32 %v1566, %v1718
        %v1720 = vadd.f32 %v1717, %v1719
        %v1721 = vmul.f32 %v1566, %v1715
        %v1722 = vadd.f32 %v1721, 0.0
        %v1723 = vmul.f32 %v1560, %v1718
        %v1724 = vsub.f32 %v1722, %v1723
        %v1725 = vperm.slane %v1560, 6
        %v1726 = vmul.f32 %v1560, %v1725
        %v1728 = vrot.slane %v1726, 4
        %v1730 = vadd.f32 %v1720, %v1728
        %v1731 = vperm.slane %v1566, 6
        %v1732 = vmul.f32 %v1566, %v1731
        %v1734 = vrot.slane %v1732, 4
        %v1736 = vadd.f32 %v1730, %v1734
        %v1737 = vmul.f32 %v1566, %v1725
        %v1739 = vrot.slane %v1737, 4
        %v1741 = vadd.f32 %v1724, %v1739
        %v1742 = vmul.f32 %v1560, %v1731
        %v1744 = vrot.slane %v1742, 4
        %v1746 = vsub.f32 %v1741, %v1744
        %v1747 = vperm.slane %v1563, 2
        %v1748 = vmul.f32 %v1563, %v1747
        %v1749 = vadd.f32 %v1736, %v1748
        %v1750 = vperm.slane %v1569, 2
        %v1751 = vmul.f32 %v1569, %v1750
        %v1752 = vadd.f32 %v1749, %v1751
        %v1753 = vmul.f32 %v1569, %v1747
        %v1754 = vadd.f32 %v1746, %v1753
        %v1755 = vmul.f32 %v1563, %v1750
        %v1756 = vsub.f32 %v1754, %v1755
        %v1757 = vperm.slane %v1563, 6
        %v1758 = vmul.f32 %v1563, %v1757
        %v1760 = vrot.slane %v1758, 4
        %v1762 = vadd.f32 %v1752, %v1760
        %v1763 = vperm.slane %v1569, 6
        %v1764 = vmul.f32 %v1569, %v1763
        %v1766 = vrot.slane %v1764, 4
        %v1768 = vadd.f32 %v1762, %v1766
        %v1769 = vmul.f32 %v1569, %v1757
        %v1771 = vrot.slane %v1769, 4
        %v1773 = vadd.f32 %v1756, %v1771
        %v1774 = vmul.f32 %v1563, %v1763
        %v1776 = vrot.slane %v1774, 4
        %v1778 = vsub.f32 %v1773, %v1776
        %vm1779 = vcmp.eq.s32.totalorder %v144, 2
        %v1780 = vsel %vm1779, 1, 0
        %v1781 = vcvt.s32.f32 %v1780
        %v1782 = vsub.f32 %v1768, %v1781
        %v1783 = vmul.f32 %v1782, %v1782
        %v1784 = vadd.f32 %v1714, %v1783
        %v1785 = vmul.f32 %v1778, %v1778
        %v1786 = vadd.f32 %v1784, %v1785
        %v1787 = vperm.slane %v1560, 3
        %v1788 = vmul.f32 %v1560, %v1787
        %v1789 = vadd.f32 %v1788, 0.0
        %v1790 = vperm.slane %v1566, 3
        %v1791 = vmul.f32 %v1566, %v1790
        %v1792 = vadd.f32 %v1789, %v1791
        %v1793 = vmul.f32 %v1566, %v1787
        %v1794 = vadd.f32 %v1793, 0.0
        %v1795 = vmul.f32 %v1560, %v1790
        %v1796 = vsub.f32 %v1794, %v1795
        %v1797 = vperm.slane %v1560, 7
        %v1798 = vmul.f32 %v1560, %v1797
        %v1800 = vrot.slane %v1798, 4
        %v1802 = vadd.f32 %v1792, %v1800
        %v1803 = vperm.slane %v1566, 7
        %v1804 = vmul.f32 %v1566, %v1803
        %v1806 = vrot.slane %v1804, 4
        %v1808 = vadd.f32 %v1802, %v1806
        %v1809 = vmul.f32 %v1566, %v1797
        %v1811 = vrot.slane %v1809, 4
        %v1813 = vadd.f32 %v1796, %v1811
        %v1814 = vmul.f32 %v1560, %v1803
        %v1816 = vrot.slane %v1814, 4
        %v1818 = vsub.f32 %v1813, %v1816
        %v1819 = vperm.slane %v1563, 3
        %v1820 = vmul.f32 %v1563, %v1819
        %v1821 = vadd.f32 %v1808, %v1820
        %v1822 = vperm.slane %v1569, 3
        %v1823 = vmul.f32 %v1569, %v1822
        %v1824 = vadd.f32 %v1821, %v1823
        %v1825 = vmul.f32 %v1569, %v1819
        %v1826 = vadd.f32 %v1818, %v1825
        %v1827 = vmul.f32 %v1563, %v1822
        %v1828 = vsub.f32 %v1826, %v1827
        %v1829 = vperm.slane %v1563, 7
        %v1830 = vmul.f32 %v1563, %v1829
        %v1832 = vrot.slane %v1830, 4
        %v1834 = vadd.f32 %v1824, %v1832
        %v1835 = vperm.slane %v1569, 7
        %v1836 = vmul.f32 %v1569, %v1835
        %v1838 = vrot.slane %v1836, 4
        %v1840 = vadd.f32 %v1834, %v1838
        %v1841 = vmul.f32 %v1569, %v1829
        %v1843 = vrot.slane %v1841, 4
        %v1845 = vadd.f32 %v1828, %v1843
        %v1846 = vmul.f32 %v1563, %v1835
        %v1848 = vrot.slane %v1846, 4
        %v1850 = vsub.f32 %v1845, %v1848
        %vm1851 = vcmp.eq.s32.totalorder %v144, 3
        %v1852 = vsel %vm1851, 1, 0
        %v1853 = vcvt.s32.f32 %v1852
        %v1854 = vsub.f32 %v1840, %v1853
        %v1855 = vmul.f32 %v1854, %v1854
        %v1856 = vadd.f32 %v1786, %v1855
        %v1857 = vmul.f32 %v1850, %v1850
        %v1858 = vadd.f32 %v1856, %v1857
        %vm1859 = vcmask 1043456
        %v1860 = vsel %vm1859, %v1858, 0.0
        %v1861 = vrot.slane %v1860, 4
        %v1862 = vadd.f32 %v1860, %v1861
        %v1863 = vrot.slane %v1862, 2
        %v1864 = vadd.f32 %v1862, %v1863
        %v1865 = vrot.slane %v1864, 1
        %v1866 = vadd.f32 %v1864, %v1865
        %1867 = vst [vmem:[%s133] sm:$0x1] %v1866
        %s1868 = sand.u32 %s71, 1
        %s1869 = scalar_lea.sflag [#allocation3], %s1868
        %s1870 = sand.u32 %s71, 1
        %s1871 = scalar_lea.vmem [#allocation2], %s1870
        // Predicated region
        $region29: #{_transversal_loss_batched.1} parent=27 // pred_check
          %p1872 = pneg %p81
        $region30: #{_transversal_loss_batched.1} parent=27 // pred_check_branch
          %1874 = sbr.rel (%p1872) target = $region32
        $region31: #{_transversal_loss_batched.1} parent=27 // pred_region
          %1876 = vsyncadd %s1869, 0
          %s1877 = scalar_lea.hbm %s2, %s16
          %s1879 = sshll.u32 %s1871, 4
          %s1880 = int_to_ptr.vmem [resolvable:$true] %s1879
          %s1881 = sshll.u32 %s1877, 4
          %s1882 = int_to_ptr.hbm [resolvable:$true] %s1881
          %1884 = dma.vmem_to_hbm [thread:$0]  %s1880, 16, %s1882, %s1869
        $region32: #{_transversal_loss_batched.1} parent=27 // pred_fallthru
          _
      $region28: #{_transversal_loss_batched.1} parent=5 // pred_fallthru
        _
      %p1885 = scmp.le.s32.totalorder 2, %s11
      // Predicated region
      $region33: #{_transversal_loss_batched.1} parent=5 // pred_check
        %p1886 = pneg %p1885
      $region34: #{_transversal_loss_batched.1} parent=5 // pred_check_branch
        %1888 = sbr.rel (%p1886) target = $region36
      $region35: #{_transversal_loss_batched.1} parent=5 // pred_region
        %s1889 = ssub.s32 %s11, 2
        // Predicated region
        $region37: #{_transversal_loss_batched.1} parent=35 // pred_check
          %p1890 = pneg %p87
        $region38: #{_transversal_loss_batched.1} parent=35 // pred_check_branch
          %1892 = sbr.rel (%p1890) target = $region40
        $region39: #{_transversal_loss_batched.1} parent=35 // pred_region
          %s1893 = sand.u32 %s72, 1
          %s1894 = scalar_lea.sflag [#allocation3], %s1893
          %s1895 = sand.u32 %s72, 1
          %s1896 = scalar_lea.vmem [#allocation2], %s1895
          %1898 = dma.done %s1894, 16
        $region40: #{_transversal_loss_batched.1} parent=35 // pred_fallthru
          _
      $region36: #{_transversal_loss_batched.1} parent=5 // pred_fallthru
        _
    $region6: #{_transversal_loss_batched.1} parent=1 // loop_footer
      %s15 = sadd.s32 1, %s11
    $region7: #{_transversal_loss_batched.1} parent=1 // loop_footer_branch
      %10 = sbr.rel target = $region3
    $region8: #{_transversal_loss_batched.1} parent=1 // loop_exit
      _
    %1899 = vsyncpa [#allocation3], 1
    %s1900 = scalar_lea.sflag [#allocation3], 1
    %1901 = vsyncpa %s1900, 1

</llo_original>
